<compile_context>
chip_gen: v6e
topology: v6e:2x2x1
jax: 0.10.0
libtpu: 0.0.40
codegen_flags: <defaults>
</compile_context>

<pallas_src>
import functools
import math

import jax
import jax.numpy as jnp
from jax.experimental import pallas as pl
from jax.experimental.pallas import tpu as pltpu


# ----------------------------- small utilities ----------------------------- #

@functools.lru_cache(maxsize=None)
def _vmem_limit_bytes():
    """Per-generation scoped-VMEM limit: 7/8 of physical, capped at 100 MiB."""
    cap = 64 * 1024 * 1024                      # safe fallback (v7x per-TC VMEM)
    try:
        cap = int(pltpu.get_tpu_info().vmem_capacity_bytes)
    except Exception:
        pass
    return int(min(cap - cap // 8, 100 * 1024 * 1024))


@functools.lru_cache(maxsize=None)
def _single_buffer_ok():
    """Feature-probe: pipeline_mode=pl.Buffered(1) on revisited weight blocks."""
    try:
        def _k(x_ref, o_ref):
            o_ref[...] = x_ref[...]

        fn = pl.pallas_call(
            _k,
            out_shape=jax.ShapeDtypeStruct((8, 128), jnp.float32),
            grid=(2,),
            in_specs=[pl.BlockSpec((8, 128), lambda i: (0, 0),
                                   pipeline_mode=pl.Buffered(1))],
            out_specs=pl.BlockSpec((8, 128), lambda i: (0, 0)),
        )
        jax.jit(fn).lower(jax.ShapeDtypeStruct((8, 128), jnp.float32)).compile()
        return True
    except Exception:
        return False


def _const_spec(arr):
    """Whole-array block revisited at every grid step (weights / biases).

    Single-buffered when supported: double-buffering a block whose index_map
    never changes only doubles its VMEM footprint.
    """
    nd = arr.ndim
    index_map = lambda *_: (0,) * nd
    if _single_buffer_ok():
        return pl.BlockSpec(arr.shape, index_map, pipeline_mode=pl.Buffered(1))
    return pl.BlockSpec(arr.shape, index_map)


# ----------------------------- in-kernel helpers ---------------------------- #

def _ln_f32(x, g, b, eps):
    """LayerNorm over the last dim; x [R,H] f32, g/b [1,H] f32."""
    mu = jnp.mean(x, axis=-1, keepdims=True)
    xc = x - mu
    var = jnp.mean(xc * xc, axis=-1, keepdims=True)
    return xc * jax.lax.rsqrt(var + eps) * g + b


def _gelu(y):
    # TODO(synk): HF BERT uses exact erf-GELU; tanh approximation used here.
    return 0.5 * y * (1.0 + jnp.tanh(0.7978845608028654 * (y + 0.044715 * y * y * y)))


# ----------------------------- Pallas kernels ------------------------------ #

def _layernorm_kernel(x_ref, g_ref, b_ref, o_ref, *, eps):
    x = x_ref[...].astype(jnp.float32)
    o_ref[...] = _ln_f32(x, g_ref[...], b_ref[...], eps).astype(o_ref.dtype)


def layernorm(x, gamma, beta, eps=1e-12):
    """Row-tiled LayerNorm(x) over the last dim. x: [M, H]."""
    M, H = x.shape
    tm = M if M <= 512 else 512          # lane-dense (tm, H) blocks, pipelined
    g2 = gamma.reshape(1, H)
    b2 = beta.reshape(1, H)
    return pl.pallas_call(
        functools.partial(_layernorm_kernel, eps=eps),
        out_shape=jax.ShapeDtypeStruct((M, H), x.dtype),
        grid=(pl.cdiv(M, tm),),
        in_specs=[pl.BlockSpec((tm, H), lambda i: (i, 0)),
                  _const_spec(g2), _const_spec(b2)],
        out_specs=pl.BlockSpec((tm, H), lambda i: (i, 0)),
        compiler_params=pltpu.CompilerParams(
            dimension_semantics=("parallel",),
            vmem_limit_bytes=_vmem_limit_bytes()),
    )(x, g2, b2)


def _encoder_layer_kernel(mask_ref, x_ref,
                          wqkv_ref, bqkv_ref, wo_ref,
                          wi_ref, bi_ref, wf_ref, hslab_ref,
                          o_ref, qkv_sc, ctx_sc, *, nh, dh, eps, t_i):
    """One full BERT encoder layer for one batch element (block = [S, H])."""
    S, H = x_ref.shape
    x = x_ref[...].astype(jnp.float32)                                   # [S, H]

    # additive attention mask built in-kernel: 0 attended, -1e9 masked
    neg_mask = (1.0 - mask_ref[0].astype(jnp.float32)) * (-1e9)          # [1, S]

    # packed [6,H] slab of per-layer vectors (one DMA instead of six)
    bo    = hslab_ref[0:1, :]
    ln1_g = hslab_ref[1:2, :]
    ln1_b = hslab_ref[2:3, :]
    bff   = hslab_ref[3:4, :]
    ln2_g = hslab_ref[4:5, :]
    ln2_b = hslab_ref[5:6, :]

    # --- fused QKV projection (1/sqrt(dh) already folded into the Q weights) ---
    qkv = jnp.dot(x.astype(jnp.bfloat16), wqkv_ref[...],
                  preferred_element_type=jnp.float32) + bqkv_ref[...]    # [S,3H]
    qkv_sc[...] = qkv.astype(jnp.bfloat16)      # stage: per-head reads = ref slices

    # --- per-head attention; contexts land in their lane slice of ctx_sc ---
    for h in range(nh):
        lo = h * dh
        qh = qkv_sc[:, lo:lo + dh]                                       # [S, dh] bf16
        kh = qkv_sc[:, H + lo:H + lo + dh]
        vh = qkv_sc[:, 2 * H + lo:2 * H + lo + dh]

        s = jax.lax.dot_general(qh, kh, (((1,), (1,)), ((), ())),
                                preferred_element_type=jnp.float32)      # [S, S]
        s = s + neg_mask
        s = s - jnp.max(s, axis=-1, keepdims=True)
        p = jnp.exp(s)
        p = p * pl.reciprocal(jnp.sum(p, axis=-1, keepdims=True), approx=True)

        ctx_sc[:, lo:lo + dh] = jnp.dot(p.astype(jnp.bfloat16), vh,
                                        preferred_element_type=jnp.float32
                                        ).astype(jnp.bfloat16)

    # --- single fused output projection: K = H feeds the full MXU depth ---
    attn_out = jnp.dot(ctx_sc[...], wo_ref[...],
                       preferred_element_type=jnp.float32) + bo          # [S, H]
    h1 = _ln_f32(attn_out + x, ln1_g, ln1_b, eps)                        # [S, H]
    h1_bf = h1.astype(jnp.bfloat16)

    # --- FFN, chunked over the intermediate dim (bounds the [S,tI] f32 temp) ---
    i_dim = wi_ref.shape[1]
    ffn = None
    for c in range(i_dim // t_i):
        co = c * t_i
        inter = jnp.dot(h1_bf, wi_ref[:, co:co + t_i],
                        preferred_element_type=jnp.float32) + bi_ref[:, co:co + t_i]
        inter = _gelu(inter)
        part = jnp.dot(inter.astype(jnp.bfloat16), wf_ref[co:co + t_i, :],
                       preferred_element_type=jnp.float32)               # [S, H]
        ffn = part if ffn is None else ffn + part
    ffn = ffn + bff
    o_ref[...] = _ln_f32(ffn + h1, ln2_g, ln2_b, eps).astype(o_ref.dtype)


def encoder_layer(x2, mask3, lyr, *, B, S, NH, Dh, eps=1e-12):
    """x2: [B*S, H] f32; mask3: [B, 1, S] f32 (1 attended / 0 padded)."""
    H = x2.shape[-1]
    I = lyr["wi"].shape[1]
    tI = I if I <= 512 else 512
    assert I % tI == 0, "intermediate dim must be a multiple of the FFN chunk"

    return pl.pallas_call(
        functools.partial(_encoder_layer_kernel, nh=NH, dh=Dh, eps=eps, t_i=tI),
        out_shape=jax.ShapeDtypeStruct((B * S, H), x2.dtype),
        grid=(B,),
        in_specs=[
            pl.BlockSpec((1, 1, S), lambda b: (b, 0, 0)),   # mask row for batch b
            pl.BlockSpec((S, H), lambda b: (b, 0)),          # token block for batch b
            _const_spec(lyr["wqkv"]),                        # [H,3H] bf16
            _const_spec(lyr["bqkv"]),                        # [1,3H] f32
            _const_spec(lyr["wo"]),                          # [H,H]  bf16
            _const_spec(lyr["wi"]),                          # [H,I]  bf16
            _const_spec(lyr["bi"]),                          # [1,I]  f32
            _const_spec(lyr["wf"]),                          # [I,H]  bf16
            _const_spec(lyr["hslab"]),                       # [6,H]  f32
        ],
        out_specs=pl.BlockSpec((S, H), lambda b: (b, 0)),
        scratch_shapes=[pltpu.VMEM((S, 3 * H), jnp.bfloat16),   # staged qkv
                        pltpu.VMEM((S, H), jnp.bfloat16)],      # per-head contexts
        compiler_params=pltpu.CompilerParams(
            dimension_semantics=("parallel",),
            vmem_limit_bytes=_vmem_limit_bytes()),
    )(mask3, x2, lyr["wqkv"], lyr["bqkv"], lyr["wo"], lyr["wi"],
      lyr["bi"], lyr["wf"], lyr["hslab"])


def _pooler_fc_kernel(x_ref, wp_ref, bp_ref, wf_ref, bf_ref, o_ref):
    x = x_ref[...].astype(jnp.float32)
    pooled = jnp.tanh(
        jnp.dot(x.astype(jnp.bfloat16), wp_ref[...],
                preferred_element_type=jnp.float32) + bp_ref[...])
    logits = jnp.dot(pooled.astype(jnp.bfloat16), wf_ref[...],
                     preferred_element_type=jnp.float32) + bf_ref[...]
    o_ref[...] = logits.astype(o_ref.dtype)


def pooler_fc(cls_tok, wp, bp, wf, bf):
    """Fused BERT pooler (tanh) + classification head. cls_tok: [B, H].

    Logits are computed into a 128-lane-padded output (unmasked stores) and
    sliced back to num_classes in JAX.
    """
    B, H = cls_tok.shape
    C = wf.shape[1]
    CP = max(128, ((C + 127) // 128) * 128)
    wf_p = jnp.pad(wf, ((0, 0), (0, CP - C)))
    bf_p = jnp.pad(bf, (0, CP - C)).reshape(1, CP)
    out = pl.pallas_call(
        _pooler_fc_kernel,
        out_shape=jax.ShapeDtypeStruct((B, CP), cls_tok.dtype),
        compiler_params=pltpu.CompilerParams(
            vmem_limit_bytes=_vmem_limit_bytes()),
    )(cls_tok, wp, bp.reshape(1, H), wf_p, bf_p)
    return out[:, :C]


# ----------------------------- parameter init ------------------------------ #

CFG = dict(
    vocab=100, type_vocab=2, max_pos=16,
    hidden=32, heads=4, head_dim=8, intermediate=128,
    layers=2, num_classes=4,
)


def init_params(key, cfg):
    std = 0.02
    H, I, Dh = cfg["hidden"], cfg["intermediate"], cfg["head_dim"]

    def nrm(k, shape):
        return std * jax.random.normal(k, shape, dtype=jnp.float32)

    keys = iter(jax.random.split(key, 8 + 8 * cfg["layers"]))
    p = dict(
        word_emb=nrm(next(keys), (cfg["vocab"], H)),
        pos_emb=nrm(next(keys), (cfg["max_pos"], H)),
        type_emb=nrm(next(keys), (cfg["type_vocab"], H)),
        emb_ln_g=jnp.ones((H,), jnp.float32),
        emb_ln_b=jnp.zeros((H,), jnp.float32),
        pool_w=nrm(next(keys), (H, H)).astype(jnp.bfloat16),
        pool_b=jnp.zeros((H,), jnp.float32),
        fc_w=nrm(next(keys), (H, cfg["num_classes"])).astype(jnp.bfloat16),
        fc_b=jnp.zeros((cfg["num_classes"],), jnp.float32),
        layers=[],
    )
    for _ in range(cfg["layers"]):
        # 1/sqrt(dh) attention scale folded into the Q weight columns (free).
        wq = nrm(next(keys), (H, H)) * (1.0 / math.sqrt(Dh))
        wk = nrm(next(keys), (H, H))
        wv = nrm(next(keys), (H, H))
        # packed [6,H] slab: bo, ln1_g, ln1_b, ffn_out_bias, ln2_g, ln2_b
        hslab = jnp.stack([
            jnp.zeros((H,), jnp.float32),   # bo
            jnp.ones((H,), jnp.float32),    # ln1_g
            jnp.zeros((H,), jnp.float32),   # ln1_b
            jnp.zeros((H,), jnp.float32),   # ffn output bias
            jnp.ones((H,), jnp.float32),    # ln2_g
            jnp.zeros((H,), jnp.float32),   # ln2_b
        ], axis=0)
        p["layers"].append(dict(
            wqkv=jnp.concatenate([wq, wk, wv], axis=1).astype(jnp.bfloat16),
            bqkv=jnp.zeros((1, 3 * H), jnp.float32),
            wo=nrm(next(keys), (H, H)).astype(jnp.bfloat16),
            wi=nrm(next(keys), (H, I)).astype(jnp.bfloat16),
            bi=jnp.zeros((1, I), jnp.float32),
            wf=nrm(next(keys), (I, H)).astype(jnp.bfloat16),
            hslab=hslab,
        ))
    return p


# ------------------------------ forward pass ------------------------------- #

def bert_class_forward(params, ids, mask, token_type_ids, cfg=CFG):
    B, S = ids.shape
    H, NH, Dh = cfg["hidden"], cfg["heads"], cfg["head_dim"]

    # ----- embeddings (gathers are glue) -----
    x = (jnp.take(params["word_emb"], ids, axis=0)
         + params["pos_emb"][:S][None, :, :]
         + jnp.take(params["type_emb"], token_type_ids, axis=0))      # [B,S,H]
    x2 = layernorm(x.reshape(B * S, H), params["emb_ln_g"], params["emb_ln_b"])

    # raw [B,1,S] mask; the additive -1e9 form is built inside the fused kernel
    mask3 = mask.astype(jnp.float32).reshape(B, 1, S)

    for lyr in params["layers"]:
        x2 = encoder_layer(x2, mask3, lyr, B=B, S=S, NH=NH, Dh=Dh)

    # ----- pooler: tanh(W * hidden[:, 0] + b), then classification fc -----
    # TODO(synk): fuse the CLS-row gather into the pooler with an Element(1)
    #             row-gather BlockSpec; strided slice kept in JAX for now.
    cls = x2[::S]                                                     # [B,H]
    logits = pooler_fc(cls, params["pool_w"], params["pool_b"],
                       params["fc_w"], params["fc_b"])                # [B,num_classes]
    return logits


# --------------------------------- main ------------------------------------ #

if __name__ == "__main__":
    key = jax.random.PRNGKey(0)
    k_param, k_ids, k_tok = jax.random.split(key, 3)

    B, S = 2, 8
    params = init_params(k_param, CFG)

    ids = jax.random.randint(k_ids, (B, S), 0, CFG["vocab"], dtype=jnp.int32)
    token_type_ids = jax.random.randint(k_tok, (B, S), 0, CFG["type_vocab"],
                                        dtype=jnp.int32)
    # attention mask: last two tokens of second sequence are padding
    mask = jnp.ones((B, S), dtype=jnp.int32).at[1, -2:].set(0)

    # Warm host-side probes outside the jit trace.
    _ = _single_buffer_ok()
    _ = _vmem_limit_bytes()

    logits = jax.jit(bert_class_forward)(params, ids, mask, token_type_ids)
    jax.block_until_ready(logits)
    assert logits.shape == (B, CFG["num_classes"])
    print("KERNEL_OK")
</pallas_src>

<mosaic_0001>
module attributes {stable_mosaic.version = 11 : i64} {
  func.func @_layernorm_kernel(%arg0: i32, %arg1: memref<16x32xf32, #tpu.memory_space<vmem>>, %arg2: memref<1x32xf32, #tpu.memory_space<vmem>>, %arg3: memref<1x32xf32, #tpu.memory_space<vmem>>, %arg4: memref<16x32xf32, #tpu.memory_space<vmem>>) attributes {dimension_semantics = [#tpu.dimension_semantics<parallel>], iteration_bounds = array<i64: 1>, scalar_prefetch = 0 : i64, scratch_operands = 0 : i64, tpu.core_type = #tpu.core_type<tc>, window_params = [{transform_indices = @transform_0, window_bounds = array<i64: 16, 32>}, {pipeline_mode = #tpu.pipeline_mode<synchronous>, transform_indices = @transform_1, window_bounds = array<i64: 1, 32>}, {pipeline_mode = #tpu.pipeline_mode<synchronous>, transform_indices = @transform_2, window_bounds = array<i64: 1, 32>}, {transform_indices = @transform_3, window_bounds = array<i64: 16, 32>}]} {
    %c0 = arith.constant 0 : index
    %c0_0 = arith.constant 0 : index
    %0 = vector.load %arg1[%c0, %c0_0] : memref<16x32xf32, #tpu.memory_space<vmem>>, vector<16x32xf32>
    %c0_1 = arith.constant 0 : index
    %c0_2 = arith.constant 0 : index
    %1 = vector.load %arg2[%c0_1, %c0_2] : memref<1x32xf32, #tpu.memory_space<vmem>>, vector<1x32xf32>
    %c0_3 = arith.constant 0 : index
    %c0_4 = arith.constant 0 : index
    %2 = vector.load %arg3[%c0_3, %c0_4] : memref<1x32xf32, #tpu.memory_space<vmem>>, vector<1x32xf32>
    %cst = arith.constant dense<0.000000e+00> : vector<16xf32>
    %3 = vector.multi_reduction <add>, %0, %cst [1] : vector<16x32xf32> to vector<16xf32>
    %4 = vector.shape_cast %3 : vector<16xf32> to vector<16x1xf32>
    %cst_5 = arith.constant 3.200000e+01 : f32
    %5 = vector.broadcast %cst_5 : f32 to vector<16x1xf32>
    %6 = arith.divf %4, %5 : vector<16x1xf32>
    %7 = vector.broadcast %6 : vector<16x1xf32> to vector<16x32xf32>
    %8 = arith.subf %0, %7 : vector<16x32xf32>
    %9 = arith.mulf %8, %8 : vector<16x32xf32>
    %cst_6 = arith.constant dense<0.000000e+00> : vector<16xf32>
    %10 = vector.multi_reduction <add>, %9, %cst_6 [1] : vector<16x32xf32> to vector<16xf32>
    %11 = vector.shape_cast %10 : vector<16xf32> to vector<16x1xf32>
    %cst_7 = arith.constant 3.200000e+01 : f32
    %12 = vector.broadcast %cst_7 : f32 to vector<16x1xf32>
    %13 = arith.divf %11, %12 : vector<16x1xf32>
    %cst_8 = arith.constant 9.99999996E-13 : f32
    %14 = vector.broadcast %cst_8 : f32 to vector<16x1xf32>
    %15 = arith.addf %13, %14 : vector<16x1xf32>
    %16 = math.rsqrt %15 : vector<16x1xf32>
    %17 = vector.broadcast %16 : vector<16x1xf32> to vector<16x32xf32>
    %18 = arith.mulf %8, %17 : vector<16x32xf32>
    %19 = vector.broadcast %1 : vector<1x32xf32> to vector<16x32xf32>
    %20 = arith.mulf %18, %19 : vector<16x32xf32>
    %21 = vector.broadcast %2 : vector<1x32xf32> to vector<16x32xf32>
    %22 = arith.addf %20, %21 : vector<16x32xf32>
    %c0_9 = arith.constant 0 : index
    %c0_10 = arith.constant 0 : index
    %23 = vector.load %arg4[%c0_9, %c0_10] : memref<16x32xf32, #tpu.memory_space<vmem>>, vector<16x32xf32>
    tpu.vector_store %arg4[%c0_9, %c0_10], %22 {strides = array<i32>} : memref<16x32xf32, #tpu.memory_space<vmem>>, vector<16x32xf32>,
    return
  }
  func.func @transform_0(%arg0: i32) -> (i32, i32) {
    %c0_i32 = arith.constant 0 : i32
    %c0_i32_0 = arith.constant 0 : i32
    return %arg0, %c0_i32 : i32, i32
  }
  func.func @transform_1(%arg0: i32) -> (i32, i32) {
    %c0_i32 = arith.constant 0 : i32
    %c0_i32_0 = arith.constant 0 : i32
    %c0_i32_1 = arith.constant 0 : i32
    return %c0_i32, %c0_i32_0 : i32, i32
  }
  func.func @transform_2(%arg0: i32) -> (i32, i32) {
    %c0_i32 = arith.constant 0 : i32
    %c0_i32_0 = arith.constant 0 : i32
    %c0_i32_1 = arith.constant 0 : i32
    return %c0_i32, %c0_i32_0 : i32, i32
  }
  func.func @transform_3(%arg0: i32) -> (i32, i32) {
    %c0_i32 = arith.constant 0 : i32
    %c0_i32_0 = arith.constant 0 : i32
    return %arg0, %c0_i32 : i32, i32
  }
}

module attributes {stable_mosaic.version = 11 : i64} {
  func.func @_encoder_layer_kernel(%arg0: i32, %arg1: memref<1x1x8xf32, #tpu.memory_space<vmem>>, %arg2: memref<8x32xf32, #tpu.memory_space<vmem>>, %arg3: memref<32x96xbf16, #tpu.memory_space<vmem>>, %arg4: memref<1x96xf32, #tpu.memory_space<vmem>>, %arg5: memref<32x32xbf16, #tpu.memory_space<vmem>>, %arg6: memref<32x128xbf16, #tpu.memory_space<vmem>>, %arg7: memref<1x128xf32, #tpu.memory_space<vmem>>, %arg8: memref<128x32xbf16, #tpu.memory_space<vmem>>, %arg9: memref<6x32xf32, #tpu.memory_space<vmem>>, %arg10: memref<8x32xf32, #tpu.memory_space<vmem>>, %arg11: memref<8x96xbf16, #tpu.memory_space<vmem>>, %arg12: memref<8x32xbf16, #tpu.memory_space<vmem>>) attributes {dimension_semantics = [#tpu.dimension_semantics<parallel>], iteration_bounds = array<i64: 2>, scalar_prefetch = 0 : i64, scratch_operands = 2 : i64, tpu.core_type = #tpu.core_type<tc>, window_params = [{transform_indices = @transform_0, window_bounds = array<i64: 1, 1, 8>}, {transform_indices = @transform_1, window_bounds = array<i64: 8, 32>}, {pipeline_mode = #tpu.pipeline_mode<synchronous>, transform_indices = @transform_2, window_bounds = array<i64: 32, 96>}, {pipeline_mode = #tpu.pipeline_mode<synchronous>, transform_indices = @transform_3, window_bounds = array<i64: 1, 96>}, {pipeline_mode = #tpu.pipeline_mode<synchronous>, transform_indices = @transform_4, window_bounds = array<i64: 32, 32>}, {pipeline_mode = #tpu.pipeline_mode<synchronous>, transform_indices = @transform_5, window_bounds = array<i64: 32, 128>}, {pipeline_mode = #tpu.pipeline_mode<synchronous>, transform_indices = @transform_6, window_bounds = array<i64: 1, 128>}, {pipeline_mode = #tpu.pipeline_mode<synchronous>, transform_indices = @transform_7, window_bounds = array<i64: 128, 32>}, {pipeline_mode = #tpu.pipeline_mode<synchronous>, transform_indices = @transform_8, window_bounds = array<i64: 6, 32>}, {transform_indices = @transform_9, window_bounds = array<i64: 8, 32>}]} {
    %c0 = arith.constant 0 : index
    %c0_0 = arith.constant 0 : index
    %0 = vector.load %arg2[%c0, %c0_0] : memref<8x32xf32, #tpu.memory_space<vmem>>, vector<8x32xf32>
    %c0_1 = arith.constant 0 : index
    %c0_2 = arith.constant 0 : index
    %c0_3 = arith.constant 0 : index
    %1 = vector.load %arg1[%c0_1, %c0_2, %c0_3] : memref<1x1x8xf32, #tpu.memory_space<vmem>>, vector<1x1x8xf32>
    %2 = vector.shape_cast %1 : vector<1x1x8xf32> to vector<1x8xf32>
    %cst = arith.constant 1.000000e+00 : f32
    %3 = vector.broadcast %cst : f32 to vector<1x8xf32>
    %4 = arith.subf %3, %2 : vector<1x8xf32>
    %cst_4 = arith.constant -1.000000e+09 : f32
    %5 = vector.broadcast %cst_4 : f32 to vector<1x8xf32>
    %6 = arith.mulf %4, %5 : vector<1x8xf32>
    %c0_5 = arith.constant 0 : index
    %c0_6 = arith.constant 0 : index
    %7 = vector.load %arg9[%c0_5, %c0_6] : memref<6x32xf32, #tpu.memory_space<vmem>>, vector<1x32xf32>
    %c1 = arith.constant 1 : index
    %c0_7 = arith.constant 0 : index
    %8 = vector.load %arg9[%c1, %c0_7] : memref<6x32xf32, #tpu.memory_space<vmem>>, vector<1x32xf32>
    %c2 = arith.constant 2 : index
    %c0_8 = arith.constant 0 : index
    %9 = vector.load %arg9[%c2, %c0_8] : memref<6x32xf32, #tpu.memory_space<vmem>>, vector<1x32xf32>
    %c3 = arith.constant 3 : index
    %c0_9 = arith.constant 0 : index
    %10 = vector.load %arg9[%c3, %c0_9] : memref<6x32xf32, #tpu.memory_space<vmem>>, vector<1x32xf32>
    %c4 = arith.constant 4 : index
    %c0_10 = arith.constant 0 : index
    %11 = vector.load %arg9[%c4, %c0_10] : memref<6x32xf32, #tpu.memory_space<vmem>>, vector<1x32xf32>
    %c5 = arith.constant 5 : index
    %c0_11 = arith.constant 0 : index
    %12 = vector.load %arg9[%c5, %c0_11] : memref<6x32xf32, #tpu.memory_space<vmem>>, vector<1x32xf32>
    %13 = arith.truncf %0 : vector<8x32xf32> to vector<8x32xbf16>
    %c0_12 = arith.constant 0 : index
    %c0_13 = arith.constant 0 : index
    %14 = vector.load %arg3[%c0_12, %c0_13] : memref<32x96xbf16, #tpu.memory_space<vmem>>, vector<32x96xbf16>
    %cst_14 = arith.constant dense<0.000000e+00> : vector<8x96xf32>
    %15 = tpu.matmul %13, %14, %cst_14 {dimension_numbers = #tpu.dot_dimension_numbers<[1], [0], [0], [1], [0, 0, 1, 1], [], []>} : vector<8x32xbf16>, vector<32x96xbf16>, vector<8x96xf32> -> vector<8x96xf32>
    %c0_15 = arith.constant 0 : index
    %c0_16 = arith.constant 0 : index
    %16 = vector.load %arg4[%c0_15, %c0_16] : memref<1x96xf32, #tpu.memory_space<vmem>>, vector<1x96xf32>
    %17 = vector.broadcast %16 : vector<1x96xf32> to vector<8x96xf32>
    %18 = arith.addf %15, %17 : vector<8x96xf32>
    %19 = arith.truncf %18 : vector<8x96xf32> to vector<8x96xbf16>
    %c0_17 = arith.constant 0 : index
    %c0_18 = arith.constant 0 : index
    %20 = vector.load %arg11[%c0_17, %c0_18] : memref<8x96xbf16, #tpu.memory_space<vmem>>, vector<8x96xbf16>
    tpu.vector_store %arg11[%c0_17, %c0_18], %19 {strides = array<i32>} : memref<8x96xbf16, #tpu.memory_space<vmem>>, vector<8x96xbf16>,
    %c0_19 = arith.constant 0 : index
    %c0_20 = arith.constant 0 : index
    %21 = vector.load %arg11[%c0_19, %c0_20] : memref<8x96xbf16, #tpu.memory_space<vmem>>, vector<8x8xbf16>
    %c0_21 = arith.constant 0 : index
    %c32 = arith.constant 32 : index
    %22 = vector.load %arg11[%c0_21, %c32] : memref<8x96xbf16, #tpu.memory_space<vmem>>, vector<8x8xbf16>
    %c0_22 = arith.constant 0 : index
    %c64 = arith.constant 64 : index
    %23 = vector.load %arg11[%c0_22, %c64] : memref<8x96xbf16, #tpu.memory_space<vmem>>, vector<8x8xbf16>
    %cst_23 = arith.constant dense<0.000000e+00> : vector<8x8xf32>
    %24 = tpu.matmul %21, %22, %cst_23 {dimension_numbers = #tpu.dot_dimension_numbers<[1], [1], [0], [0], [0, 0, 1, 0], [], []>} : vector<8x8xbf16>, vector<8x8xbf16>, vector<8x8xf32> -> vector<8x8xf32>
    %25 = vector.broadcast %6 : vector<1x8xf32> to vector<8x8xf32>
    %26 = arith.addf %24, %25 : vector<8x8xf32>
    %cst_24 = arith.constant dense<0xFF800000> : vector<8xf32>
    %27 = vector.multi_reduction <maximumf>, %26, %cst_24 [1] : vector<8x8xf32> to vector<8xf32>
    %28 = vector.shape_cast %27 : vector<8xf32> to vector<8x1xf32>
    %29 = vector.broadcast %28 : vector<8x1xf32> to vector<8x8xf32>
    %30 = arith.subf %26, %29 : vector<8x8xf32>
    %31 = math.exp %30 : vector<8x8xf32>
    %cst_25 = arith.constant dense<0.000000e+00> : vector<8xf32>
    %32 = vector.multi_reduction <add>, %31, %cst_25 [1] : vector<8x8xf32> to vector<8xf32>
    %33 = vector.shape_cast %32 : vector<8xf32> to vector<8x1xf32>
    %34 = tpu.reciprocal %33 {approx = true} : vector<8x1xf32> -> vector<8x1xf32>
    %35 = vector.broadcast %34 : vector<8x1xf32> to vector<8x8xf32>
    %36 = arith.mulf %31, %35 : vector<8x8xf32>
    %37 = arith.truncf %36 : vector<8x8xf32> to vector<8x8xbf16>
    %cst_26 = arith.constant dense<0.000000e+00> : vector<8x8xf32>
    %38 = tpu.matmul %37, %23, %cst_26 {dimension_numbers = #tpu.dot_dimension_numbers<[1], [0], [0], [1], [0, 0, 1, 1], [], []>} : vector<8x8xbf16>, vector<8x8xbf16>, vector<8x8xf32> -> vector<8x8xf32>
    %39 = arith.truncf %38 : vector<8x8xf32> to vector<8x8xbf16>
    %c0_27 = arith.constant 0 : index
    %c0_28 = arith.constant 0 : index
    %40 = vector.load %arg12[%c0_27, %c0_28] : memref<8x32xbf16, #tpu.memory_space<vmem>>, vector<8x8xbf16>
    tpu.vector_store %arg12[%c0_27, %c0_28], %39 {strides = array<i32>} : memref<8x32xbf16, #tpu.memory_space<vmem>>, vector<8x8xbf16>,
    %c0_29 = arith.constant 0 : index
    %c8 = arith.constant 8 : index
    %41 = vector.load %arg11[%c0_29, %c8] : memref<8x96xbf16, #tpu.memory_space<vmem>>, vector<8x8xbf16>
    %c0_30 = arith.constant 0 : index
    %c40 = arith.constant 40 : index
    %42 = vector.load %arg11[%c0_30, %c40] : memref<8x96xbf16, #tpu.memory_space<vmem>>, vector<8x8xbf16>
    %c0_31 = arith.constant 0 : index
    %c72 = arith.constant 72 : index
    %43 = vector.load %arg11[%c0_31, %c72] : memref<8x96xbf16, #tpu.memory_space<vmem>>, vector<8x8xbf16>
    %cst_32 = arith.constant dense<0.000000e+00> : vector<8x8xf32>
    %44 = tpu.matmul %41, %42, %cst_32 {dimension_numbers = #tpu.dot_dimension_numbers<[1], [1], [0], [0], [0, 0, 1, 0], [], []>} : vector<8x8xbf16>, vector<8x8xbf16>, vector<8x8xf32> -> vector<8x8xf32>
    %45 = vector.broadcast %6 : vector<1x8xf32> to vector<8x8xf32>
    %46 = arith.addf %44, %45 : vector<8x8xf32>
    %cst_33 = arith.constant dense<0xFF800000> : vector<8xf32>
    %47 = vector.multi_reduction <maximumf>, %46, %cst_33 [1] : vector<8x8xf32> to vector<8xf32>
    %48 = vector.shape_cast %47 : vector<8xf32> to vector<8x1xf32>
    %49 = vector.broadcast %48 : vector<8x1xf32> to vector<8x8xf32>
    %50 = arith.subf %46, %49 : vector<8x8xf32>
    %51 = math.exp %50 : vector<8x8xf32>
    %cst_34 = arith.constant dense<0.000000e+00> : vector<8xf32>
    %52 = vector.multi_reduction <add>, %51, %cst_34 [1] : vector<8x8xf32> to vector<8xf32>
    %53 = vector.shape_cast %52 : vector<8xf32> to vector<8x1xf32>
    %54 = tpu.reciprocal %53 {approx = true} : vector<8x1xf32> -> vector<8x1xf32>
    %55 = vector.broadcast %54 : vector<8x1xf32> to vector<8x8xf32>
    %56 = arith.mulf %51, %55 : vector<8x8xf32>
    %57 = arith.truncf %56 : vector<8x8xf32> to vector<8x8xbf16>
    %cst_35 = arith.constant dense<0.000000e+00> : vector<8x8xf32>
    %58 = tpu.matmul %57, %43, %cst_35 {dimension_numbers = #tpu.dot_dimension_numbers<[1], [0], [0], [1], [0, 0, 1, 1], [], []>} : vector<8x8xbf16>, vector<8x8xbf16>, vector<8x8xf32> -> vector<8x8xf32>
    %59 = arith.truncf %58 : vector<8x8xf32> to vector<8x8xbf16>
    %c0_36 = arith.constant 0 : index
    %c8_37 = arith.constant 8 : index
    %60 = vector.load %arg12[%c0_36, %c8_37] : memref<8x32xbf16, #tpu.memory_space<vmem>>, vector<8x8xbf16>
    tpu.vector_store %arg12[%c0_36, %c8_37], %59 {strides = array<i32>} : memref<8x32xbf16, #tpu.memory_space<vmem>>, vector<8x8xbf16>,
    %c0_38 = arith.constant 0 : index
    %c16 = arith.constant 16 : index
    %61 = vector.load %arg11[%c0_38, %c16] : memref<8x96xbf16, #tpu.memory_space<vmem>>, vector<8x8xbf16>
    %c0_39 = arith.constant 0 : index
    %c48 = arith.constant 48 : index
    %62 = vector.load %arg11[%c0_39, %c48] : memref<8x96xbf16, #tpu.memory_space<vmem>>, vector<8x8xbf16>
    %c0_40 = arith.constant 0 : index
    %c80 = arith.constant 80 : index
    %63 = vector.load %arg11[%c0_40, %c80] : memref<8x96xbf16, #tpu.memory_space<vmem>>, vector<8x8xbf16>
    %cst_41 = arith.constant dense<0.000000e+00> : vector<8x8xf32>
    %64 = tpu.matmul %61, %62, %cst_41 {dimension_numbers = #tpu.dot_dimension_numbers<[1], [1], [0], [0], [0, 0, 1, 0], [], []>} : vector<8x8xbf16>, vector<8x8xbf16>, vector<8x8xf32> -> vector<8x8xf32>
    %65 = vector.broadcast %6 : vector<1x8xf32> to vector<8x8xf32>
    %66 = arith.addf %64, %65 : vector<8x8xf32>
    %cst_42 = arith.constant dense<0xFF800000> : vector<8xf32>
    %67 = vector.multi_reduction <maximumf>, %66, %cst_42 [1] : vector<8x8xf32> to vector<8xf32>
    %68 = vector.shape_cast %67 : vector<8xf32> to vector<8x1xf32>
    %69 = vector.broadcast %68 : vector<8x1xf32> to vector<8x8xf32>
    %70 = arith.subf %66, %69 : vector<8x8xf32>
    %71 = math.exp %70 : vector<8x8xf32>
    %cst_43 = arith.constant dense<0.000000e+00> : vector<8xf32>
    %72 = vector.multi_reduction <add>, %71, %cst_43 [1] : vector<8x8xf32> to vector<8xf32>
    %73 = vector.shape_cast %72 : vector<8xf32> to vector<8x1xf32>
    %74 = tpu.reciprocal %73 {approx = true} : vector<8x1xf32> -> vector<8x1xf32>
    %75 = vector.broadcast %74 : vector<8x1xf32> to vector<8x8xf32>
    %76 = arith.mulf %71, %75 : vector<8x8xf32>
    %77 = arith.truncf %76 : vector<8x8xf32> to vector<8x8xbf16>
    %cst_44 = arith.constant dense<0.000000e+00> : vector<8x8xf32>
    %78 = tpu.matmul %77, %63, %cst_44 {dimension_numbers = #tpu.dot_dimension_numbers<[1], [0], [0], [1], [0, 0, 1, 1], [], []>} : vector<8x8xbf16>, vector<8x8xbf16>, vector<8x8xf32> -> vector<8x8xf32>
    %79 = arith.truncf %78 : vector<8x8xf32> to vector<8x8xbf16>
    %c0_45 = arith.constant 0 : index
    %c16_46 = arith.constant 16 : index
    %80 = vector.load %arg12[%c0_45, %c16_46] : memref<8x32xbf16, #tpu.memory_space<vmem>>, vector<8x8xbf16>
    tpu.vector_store %arg12[%c0_45, %c16_46], %79 {strides = array<i32>} : memref<8x32xbf16, #tpu.memory_space<vmem>>, vector<8x8xbf16>,
    %c0_47 = arith.constant 0 : index
    %c24 = arith.constant 24 : index
    %81 = vector.load %arg11[%c0_47, %c24] : memref<8x96xbf16, #tpu.memory_space<vmem>>, vector<8x8xbf16>
    %c0_48 = arith.constant 0 : index
    %c56 = arith.constant 56 : index
    %82 = vector.load %arg11[%c0_48, %c56] : memref<8x96xbf16, #tpu.memory_space<vmem>>, vector<8x8xbf16>
    %c0_49 = arith.constant 0 : index
    %c88 = arith.constant 88 : index
    %83 = vector.load %arg11[%c0_49, %c88] : memref<8x96xbf16, #tpu.memory_space<vmem>>, vector<8x8xbf16>
    %cst_50 = arith.constant dense<0.000000e+00> : vector<8x8xf32>
    %84 = tpu.matmul %81, %82, %cst_50 {dimension_numbers = #tpu.dot_dimension_numbers<[1], [1], [0], [0], [0, 0, 1, 0], [], []>} : vector<8x8xbf16>, vector<8x8xbf16>, vector<8x8xf32> -> vector<8x8xf32>
    %85 = vector.broadcast %6 : vector<1x8xf32> to vector<8x8xf32>
    %86 = arith.addf %84, %85 : vector<8x8xf32>
    %cst_51 = arith.constant dense<0xFF800000> : vector<8xf32>
    %87 = vector.multi_reduction <maximumf>, %86, %cst_51 [1] : vector<8x8xf32> to vector<8xf32>
    %88 = vector.shape_cast %87 : vector<8xf32> to vector<8x1xf32>
    %89 = vector.broadcast %88 : vector<8x1xf32> to vector<8x8xf32>
    %90 = arith.subf %86, %89 : vector<8x8xf32>
    %91 = math.exp %90 : vector<8x8xf32>
    %cst_52 = arith.constant dense<0.000000e+00> : vector<8xf32>
    %92 = vector.multi_reduction <add>, %91, %cst_52 [1] : vector<8x8xf32> to vector<8xf32>
    %93 = vector.shape_cast %92 : vector<8xf32> to vector<8x1xf32>
    %94 = tpu.reciprocal %93 {approx = true} : vector<8x1xf32> -> vector<8x1xf32>
    %95 = vector.broadcast %94 : vector<8x1xf32> to vector<8x8xf32>
    %96 = arith.mulf %91, %95 : vector<8x8xf32>
    %97 = arith.truncf %96 : vector<8x8xf32> to vector<8x8xbf16>
    %cst_53 = arith.constant dense<0.000000e+00> : vector<8x8xf32>
    %98 = tpu.matmul %97, %83, %cst_53 {dimension_numbers = #tpu.dot_dimension_numbers<[1], [0], [0], [1], [0, 0, 1, 1], [], []>} : vector<8x8xbf16>, vector<8x8xbf16>, vector<8x8xf32> -> vector<8x8xf32>
    %99 = arith.truncf %98 : vector<8x8xf32> to vector<8x8xbf16>
    %c0_54 = arith.constant 0 : index
    %c24_55 = arith.constant 24 : index
    %100 = vector.load %arg12[%c0_54, %c24_55] : memref<8x32xbf16, #tpu.memory_space<vmem>>, vector<8x8xbf16>
    tpu.vector_store %arg12[%c0_54, %c24_55], %99 {strides = array<i32>} : memref<8x32xbf16, #tpu.memory_space<vmem>>, vector<8x8xbf16>,
    %c0_56 = arith.constant 0 : index
    %c0_57 = arith.constant 0 : index
    %101 = vector.load %arg12[%c0_56, %c0_57] : memref<8x32xbf16, #tpu.memory_space<vmem>>, vector<8x32xbf16>
    %c0_58 = arith.constant 0 : index
    %c0_59 = arith.constant 0 : index
    %102 = vector.load %arg5[%c0_58, %c0_59] : memref<32x32xbf16, #tpu.memory_space<vmem>>, vector<32x32xbf16>
    %cst_60 = arith.constant dense<0.000000e+00> : vector<8x32xf32>
    %103 = tpu.matmul %101, %102, %cst_60 {dimension_numbers = #tpu.dot_dimension_numbers<[1], [0], [0], [1], [0, 0, 1, 1], [], []>} : vector<8x32xbf16>, vector<32x32xbf16>, vector<8x32xf32> -> vector<8x32xf32>
    %104 = vector.broadcast %7 : vector<1x32xf32> to vector<8x32xf32>
    %105 = arith.addf %103, %104 : vector<8x32xf32>
    %106 = arith.addf %105, %0 : vector<8x32xf32>
    %cst_61 = arith.constant dense<0.000000e+00> : vector<8xf32>
    %107 = vector.multi_reduction <add>, %106, %cst_61 [1] : vector<8x32xf32> to vector<8xf32>
    %108 = vector.shape_cast %107 : vector<8xf32> to vector<8x1xf32>
    %cst_62 = arith.constant 3.200000e+01 : f32
    %109 = vector.broadcast %cst_62 : f32 to vector<8x1xf32>
    %110 = arith.divf %108, %109 : vector<8x1xf32>
    %111 = vector.broadcast %110 : vector<8x1xf32> to vector<8x32xf32>
    %112 = arith.subf %106, %111 : vector<8x32xf32>
    %113 = arith.mulf %112, %112 : vector<8x32xf32>
    %cst_63 = arith.constant dense<0.000000e+00> : vector<8xf32>
    %114 = vector.multi_reduction <add>, %113, %cst_63 [1] : vector<8x32xf32> to vector<8xf32>
    %115 = vector.shape_cast %114 : vector<8xf32> to vector<8x1xf32>
    %cst_64 = arith.constant 3.200000e+01 : f32
    %116 = vector.broadcast %cst_64 : f32 to vector<8x1xf32>
    %117 = arith.divf %115, %116 : vector<8x1xf32>
    %cst_65 = arith.constant 9.99999996E-13 : f32
    %118 = vector.broadcast %cst_65 : f32 to vector<8x1xf32>
    %119 = arith.addf %117, %118 : vector<8x1xf32>
    %120 = math.rsqrt %119 : vector<8x1xf32>
    %121 = vector.broadcast %120 : vector<8x1xf32> to vector<8x32xf32>
    %122 = arith.mulf %112, %121 : vector<8x32xf32>
    %123 = vector.broadcast %8 : vector<1x32xf32> to vector<8x32xf32>
    %124 = arith.mulf %122, %123 : vector<8x32xf32>
    %125 = vector.broadcast %9 : vector<1x32xf32> to vector<8x32xf32>
    %126 = arith.addf %124, %125 : vector<8x32xf32>
    %127 = arith.truncf %126 : vector<8x32xf32> to vector<8x32xbf16>
    %c0_66 = arith.constant 0 : index
    %c0_67 = arith.constant 0 : index
    %128 = vector.load %arg6[%c0_66, %c0_67] : memref<32x128xbf16, #tpu.memory_space<vmem>>, vector<32x128xbf16>
    %cst_68 = arith.constant dense<0.000000e+00> : vector<8x128xf32>
    %129 = tpu.matmul %127, %128, %cst_68 {dimension_numbers = #tpu.dot_dimension_numbers<[1], [0], [0], [1], [0, 0, 1, 1], [], []>} : vector<8x32xbf16>, vector<32x128xbf16>, vector<8x128xf32> -> vector<8x128xf32>
    %c0_69 = arith.constant 0 : index
    %c0_70 = arith.constant 0 : index
    %130 = vector.load %arg7[%c0_69, %c0_70] : memref<1x128xf32, #tpu.memory_space<vmem>>, vector<1x128xf32>
    %131 = vector.broadcast %130 : vector<1x128xf32> to vector<8x128xf32>
    %132 = arith.addf %129, %131 : vector<8x128xf32>
    %cst_71 = arith.constant 5.000000e-01 : f32
    %133 = vector.broadcast %cst_71 : f32 to vector<8x128xf32>
    %134 = arith.mulf %133, %132 : vector<8x128xf32>
    %cst_72 = arith.constant 4.471500e-02 : f32
    %135 = vector.broadcast %cst_72 : f32 to vector<8x128xf32>
    %136 = arith.mulf %135, %132 : vector<8x128xf32>
    %137 = arith.mulf %136, %132 : vector<8x128xf32>
    %138 = arith.mulf %137, %132 : vector<8x128xf32>
    %139 = arith.addf %132, %138 : vector<8x128xf32>
    %cst_73 = arith.constant 0.797884583 : f32
    %140 = vector.broadcast %cst_73 : f32 to vector<8x128xf32>
    %141 = arith.mulf %140, %139 : vector<8x128xf32>
    %142 = math.tanh %141 : vector<8x128xf32>
    %cst_74 = arith.constant 1.000000e+00 : f32
    %143 = vector.broadcast %cst_74 : f32 to vector<8x128xf32>
    %144 = arith.addf %143, %142 : vector<8x128xf32>
    %145 = arith.mulf %134, %144 : vector<8x128xf32>
    %146 = arith.truncf %145 : vector<8x128xf32> to vector<8x128xbf16>
    %c0_75 = arith.constant 0 : index
    %c0_76 = arith.constant 0 : index
    %147 = vector.load %arg8[%c0_75, %c0_76] : memref<128x32xbf16, #tpu.memory_space<vmem>>, vector<128x32xbf16>
    %cst_77 = arith.constant dense<0.000000e+00> : vector<8x32xf32>
    %148 = tpu.matmul %146, %147, %cst_77 {dimension_numbers = #tpu.dot_dimension_numbers<[1], [0], [0], [1], [0, 0, 1, 1], [], []>} : vector<8x128xbf16>, vector<128x32xbf16>, vector<8x32xf32> -> vector<8x32xf32>
    %149 = vector.broadcast %10 : vector<1x32xf32> to vector<8x32xf32>
    %150 = arith.addf %148, %149 : vector<8x32xf32>
    %151 = arith.addf %150, %126 : vector<8x32xf32>
    %cst_78 = arith.constant dense<0.000000e+00> : vector<8xf32>
    %152 = vector.multi_reduction <add>, %151, %cst_78 [1] : vector<8x32xf32> to vector<8xf32>
    %153 = vector.shape_cast %152 : vector<8xf32> to vector<8x1xf32>
    %cst_79 = arith.constant 3.200000e+01 : f32
    %154 = vector.broadcast %cst_79 : f32 to vector<8x1xf32>
    %155 = arith.divf %153, %154 : vector<8x1xf32>
    %156 = vector.broadcast %155 : vector<8x1xf32> to vector<8x32xf32>
    %157 = arith.subf %151, %156 : vector<8x32xf32>
    %158 = arith.mulf %157, %157 : vector<8x32xf32>
    %cst_80 = arith.constant dense<0.000000e+00> : vector<8xf32>
    %159 = vector.multi_reduction <add>, %158, %cst_80 [1] : vector<8x32xf32> to vector<8xf32>
    %160 = vector.shape_cast %159 : vector<8xf32> to vector<8x1xf32>
    %cst_81 = arith.constant 3.200000e+01 : f32
    %161 = vector.broadcast %cst_81 : f32 to vector<8x1xf32>
    %162 = arith.divf %160, %161 : vector<8x1xf32>
    %cst_82 = arith.constant 9.99999996E-13 : f32
    %163 = vector.broadcast %cst_82 : f32 to vector<8x1xf32>
    %164 = arith.addf %162, %163 : vector<8x1xf32>
    %165 = math.rsqrt %164 : vector<8x1xf32>
    %166 = vector.broadcast %165 : vector<8x1xf32> to vector<8x32xf32>
    %167 = arith.mulf %157, %166 : vector<8x32xf32>
    %168 = vector.broadcast %11 : vector<1x32xf32> to vector<8x32xf32>
    %169 = arith.mulf %167, %168 : vector<8x32xf32>
    %170 = vector.broadcast %12 : vector<1x32xf32> to vector<8x32xf32>
    %171 = arith.addf %169, %170 : vector<8x32xf32>
    %c0_83 = arith.constant 0 : index
    %c0_84 = arith.constant 0 : index
    %172 = vector.load %arg10[%c0_83, %c0_84] : memref<8x32xf32, #tpu.memory_space<vmem>>, vector<8x32xf32>
    tpu.vector_store %arg10[%c0_83, %c0_84], %171 {strides = array<i32>} : memref<8x32xf32, #tpu.memory_space<vmem>>, vector<8x32xf32>,
    return
  }
  func.func @transform_0(%arg0: i32) -> (i32, i32, i32) {
    %c0_i32 = arith.constant 0 : i32
    %c0_i32_0 = arith.constant 0 : i32
    %c0_i32_1 = arith.constant 0 : i32
    return %arg0, %c0_i32, %c0_i32_0 : i32, i32, i32
  }
  func.func @transform_1(%arg0: i32) -> (i32, i32) {
    %c0_i32 = arith.constant 0 : i32
    %c0_i32_0 = arith.constant 0 : i32
    return %arg0, %c0_i32 : i32, i32
  }
  func.func @transform_2(%arg0: i32) -> (i32, i32) {
    %c0_i32 = arith.constant 0 : i32
    %c0_i32_0 = arith.constant 0 : i32
    %c0_i32_1 = arith.constant 0 : i32
    return %c0_i32, %c0_i32_0 : i32, i32
  }
  func.func @transform_3(%arg0: i32) -> (i32, i32) {
    %c0_i32 = arith.constant 0 : i32
    %c0_i32_0 = arith.constant 0 : i32
    %c0_i32_1 = arith.constant 0 : i32
    return %c0_i32, %c0_i32_0 : i32, i32
  }
  func.func @transform_4(%arg0: i32) -> (i32, i32) {
    %c0_i32 = arith.constant 0 : i32
    %c0_i32_0 = arith.constant 0 : i32
    %c0_i32_1 = arith.constant 0 : i32
    return %c0_i32, %c0_i32_0 : i32, i32
  }
  func.func @transform_5(%arg0: i32) -> (i32, i32) {
    %c0_i32 = arith.constant 0 : i32
    %c0_i32_0 = arith.constant 0 : i32
    %c0_i32_1 = arith.constant 0 : i32
    return %c0_i32, %c0_i32_0 : i32, i32
  }
  func.func @transform_6(%arg0: i32) -> (i32, i32) {
    %c0_i32 = arith.constant 0 : i32
    %c0_i32_0 = arith.constant 0 : i32
    %c0_i32_1 = arith.constant 0 : i32
    return %c0_i32, %c0_i32_0 : i32, i32
  }
  func.func @transform_7(%arg0: i32) -> (i32, i32) {
    %c0_i32 = arith.constant 0 : i32
    %c0_i32_0 = arith.constant 0 : i32
    %c0_i32_1 = arith.constant 0 : i32
    return %c0_i32, %c0_i32_0 : i32, i32
  }
  func.func @transform_8(%arg0: i32) -> (i32, i32) {
    %c0_i32 = arith.constant 0 : i32
    %c0_i32_0 = arith.constant 0 : i32
    %c0_i32_1 = arith.constant 0 : i32
    return %c0_i32, %c0_i32_0 : i32, i32
  }
  func.func @transform_9(%arg0: i32) -> (i32, i32) {
    %c0_i32 = arith.constant 0 : i32
    %c0_i32_0 = arith.constant 0 : i32
    return %arg0, %c0_i32 : i32, i32
  }
}

module attributes {stable_mosaic.version = 11 : i64} {
  func.func @_pooler_fc_kernel(%arg0: memref<2x32xf32, #tpu.memory_space<vmem>>, %arg1: memref<32x32xbf16, #tpu.memory_space<vmem>>, %arg2: memref<1x32xf32, #tpu.memory_space<vmem>>, %arg3: memref<32x128xbf16, #tpu.memory_space<vmem>>, %arg4: memref<1x128xf32, #tpu.memory_space<vmem>>, %arg5: memref<2x128xf32, #tpu.memory_space<vmem>>) attributes {dimension_semantics = [], scalar_prefetch = 0 : i64, scratch_operands = 0 : i64, tpu.core_type = #tpu.core_type<tc>} {
    %c0 = arith.constant 0 : index
    %c0_0 = arith.constant 0 : index
    %0 = vector.load %arg0[%c0, %c0_0] : memref<2x32xf32, #tpu.memory_space<vmem>>, vector<2x32xf32>
    %1 = arith.truncf %0 : vector<2x32xf32> to vector<2x32xbf16>
    %c0_1 = arith.constant 0 : index
    %c0_2 = arith.constant 0 : index
    %2 = vector.load %arg1[%c0_1, %c0_2] : memref<32x32xbf16, #tpu.memory_space<vmem>>, vector<32x32xbf16>
    %cst = arith.constant dense<0.000000e+00> : vector<2x32xf32>
    %3 = tpu.matmul %1, %2, %cst {dimension_numbers = #tpu.dot_dimension_numbers<[1], [0], [0], [1], [0, 0, 1, 1], [], []>} : vector<2x32xbf16>, vector<32x32xbf16>, vector<2x32xf32> -> vector<2x32xf32>
    %c0_3 = arith.constant 0 : index
    %c0_4 = arith.constant 0 : index
    %4 = vector.load %arg2[%c0_3, %c0_4] : memref<1x32xf32, #tpu.memory_space<vmem>>, vector<1x32xf32>
    %5 = vector.broadcast %4 : vector<1x32xf32> to vector<2x32xf32>
    %6 = arith.addf %3, %5 : vector<2x32xf32>
    %7 = math.tanh %6 : vector<2x32xf32>
    %8 = arith.truncf %7 : vector<2x32xf32> to vector<2x32xbf16>
    %c0_5 = arith.constant 0 : index
    %c0_6 = arith.constant 0 : index
    %9 = vector.load %arg3[%c0_5, %c0_6] : memref<32x128xbf16, #tpu.memory_space<vmem>>, vector<32x128xbf16>
    %cst_7 = arith.constant dense<0.000000e+00> : vector<2x128xf32>
    %10 = tpu.matmul %8, %9, %cst_7 {dimension_numbers = #tpu.dot_dimension_numbers<[1], [0], [0], [1], [0, 0, 1, 1], [], []>} : vector<2x32xbf16>, vector<32x128xbf16>, vector<2x128xf32> -> vector<2x128xf32>
    %c0_8 = arith.constant 0 : index
    %c0_9 = arith.constant 0 : index
    %11 = vector.load %arg4[%c0_8, %c0_9] : memref<1x128xf32, #tpu.memory_space<vmem>>, vector<1x128xf32>
    %12 = vector.broadcast %11 : vector<1x128xf32> to vector<2x128xf32>
    %13 = arith.addf %10, %12 : vector<2x128xf32>
    %c0_10 = arith.constant 0 : index
    %c0_11 = arith.constant 0 : index
    %14 = vector.load %arg5[%c0_10, %c0_11] : memref<2x128xf32, #tpu.memory_space<vmem>>, vector<2x128xf32>
    tpu.vector_store %arg5[%c0_10, %c0_11], %13 {strides = array<i32>} : memref<2x128xf32, #tpu.memory_space<vmem>>, vector<2x128xf32>,
    return
  }
}

</mosaic_0001>

<llo_original>
// kernel: bert_class_forward.4
$region0: #{bert_class_forward.4}
  #allocation0 [shape = 'u32[]', space=smem, size = 0x4, offset = 0x4, fixed_abs, tag = 'smem constant byte address 0x4 - core index']
  #allocation1 [shape = 'u32[144,128]{1,0:T(1,128)}', space=vmem, size = 0x12000, scoped, tag = 'internal scratch']
  %s0 = inlined_call_operand.vmem [shape: f32[16,32], index: 0, kind: input, shape index: {}]
  %s1 = inlined_call_operand.vmem [shape: f32[1,32], index: 1, kind: input, shape index: {}]
  %s2 = inlined_call_operand.vmem [shape: f32[1,32], index: 2, kind: input, shape index: {}]
  %s3 = inlined_call_operand.vmem [shape: f32[16,32], index: 3, kind: output, shape index: {}]
  %s4 = sld [smem:[#allocation0]]
  $region22: #{bert_class_forward.4} parent=0
    _
  %s6 = ssub.s32 1, %s4
  %s7 = scalar_select 0, %s6, %s4
  // Predicated region
  $region2: #{bert_class_forward.4} parent=0 // pred_check
    _
  $region3: #{bert_class_forward.4} parent=0 // pred_check_branch
    %9 = sbr.rel (0) target = $region5
  $region4: #{bert_class_forward.4} parent=0 // pred_region
    _
  $region5: #{bert_class_forward.4} parent=0 // pred_fallthru
    _
  // Predicated region
  $region6: #{bert_class_forward.4} parent=0 // pred_check
    _
  $region7: #{bert_class_forward.4} parent=0 // pred_check_branch
    %11 = sbr.rel (0) target = $region9
  $region8: #{bert_class_forward.4} parent=0 // pred_region
    _
  $region9: #{bert_class_forward.4} parent=0 // pred_fallthru
    _
  // Predicated region
  $region10: #{bert_class_forward.4} parent=0 // pred_check
    _
  $region11: #{bert_class_forward.4} parent=0 // pred_check_branch
    %13 = sbr.rel (0) target = $region13
  $region12: #{bert_class_forward.4} parent=0 // pred_region
    _
  $region13: #{bert_class_forward.4} parent=0 // pred_fallthru
    _
  %v14 = vld [vmem:[%s0] sm:$0xff]
  %v15 = vld [vmem:[%s0 + $0x8] sm:$0xff]
  %v16 = vld [vmem:[%s1] sm:$0x1]
  %v17 = vld [vmem:[%s2] sm:$0x1]
  %vm18 = vcmask 261120
  %v19 = vsel %vm18, %v14, 0.0
  %20 = vadd.xlane.f32.xlu0 %v19
  %v21 = vpop.xlane.xlu0 %20
  %v22 = vsel %vm18, %v15, 0.0
  %23 = vadd.xlane.f32.xlu0 %v22
  %v24 = vpop.xlane.xlu0 %23
  %v25 = vrcp.pop 32.0
  %v26 = vmul.f32 %v21, %v25
  %v27 = vmul.f32 %v24, %v25
  %v28 = vsub.f32 %v14, %v26
  %v29 = vsub.f32 %v15, %v27
  %v30 = vmul.f32 %v28, %v28
  %v31 = vmul.f32 %v29, %v29
  %v32 = vsel %vm18, %v30, 0.0
  %33 = vadd.xlane.f32.xlu0 %v32
  %v34 = vpop.xlane.xlu0 %33
  %v35 = vsel %vm18, %v31, 0.0
  %36 = vadd.xlane.f32.xlu0 %v35
  %v37 = vpop.xlane.xlu0 %36
  %v38 = vmul.f32 %v34, %v25
  %v39 = vmul.f32 %v37, %v25
  %v40 = vadd.f32 %v38, 1e-12
  %v41 = vadd.f32 %v39, 1e-12
  %v42 = vrsqrt.pop %v40
  %v43 = vrsqrt.pop %v41
  %v44 = vmul.f32 %v28, %v42
  %v45 = vmul.f32 %v29, %v43
  %v47 = vlaneseq
  %v48 = vshrl.u32 %v47, 7
  %v49 = vsub.s32 0, %v48
  %v50 = vrot.slane %v16, %v49
  %v52 = vmul.f32 %v44, %v50
  %v53 = vmul.f32 %v45, %v50
  %v55 = vlaneseq
  %v56 = vshrl.u32 %v55, 7
  %v57 = vsub.s32 0, %v56
  %v58 = vrot.slane %v17, %v57
  %v60 = vadd.f32 %v52, %v58
  %v61 = vadd.f32 %v53, %v58
  %62 = vst.msk [vmem:[%s3] sm:$0xff] %vm18, %v60
  %63 = vst.msk [vmem:[%s3 + $0x8] sm:$0xff] %vm18, %v61
  // Predicated region
  $region14: #{bert_class_forward.4} parent=0 // pred_check
    _
  $region15: #{bert_class_forward.4} parent=0 // pred_check_branch
    %65 = sbr.rel (0) target = $region17
  $region16: #{bert_class_forward.4} parent=0 // pred_region
    _
  $region17: #{bert_class_forward.4} parent=0 // pred_fallthru
    _
  // Predicated region
  $region18: #{bert_class_forward.4} parent=0 // pred_check
    _
  $region19: #{bert_class_forward.4} parent=0 // pred_check_branch
    %67 = sbr.rel (0) target = $region21
  $region20: #{bert_class_forward.4} parent=0 // pred_region
    _
  $region21: #{bert_class_forward.4} parent=0 // pred_fallthru
    _

// kernel: bert_class_forward.7
$region0: #{bert_class_forward.7}
  #allocation0 [shape = 'u32[]', space=smem, size = 0x4, offset = 0x4, fixed_abs, tag = 'smem constant byte address 0x4 - core index']
  #allocation1 [shape = 'u32[144,128]{1,0:T(1,128)}', space=vmem, size = 0x12000, scoped, tag = 'internal scratch']
  %s0 = inlined_call_operand.vmem [shape: f32[2,32], index: 0, kind: input, shape index: {}]
  %s1 = inlined_call_operand.vmem [shape: bf16[32,32], index: 1, kind: input, shape index: {}]
  %s2 = inlined_call_operand.vmem [shape: f32[1,32], index: 2, kind: input, shape index: {}]
  %s3 = inlined_call_operand.vmem [shape: bf16[32,128], index: 3, kind: input, shape index: {}]
  %s4 = inlined_call_operand.vmem [shape: f32[1,128], index: 4, kind: input, shape index: {}]
  %s5 = inlined_call_operand.hbm [shape: f32[2,128], index: 5, kind: output, shape index: {}]
  %s6 = sld [smem:[#allocation0]]
  $region30: #{bert_class_forward.7} parent=0
    _
  %s8 = ssub.s32 1, %s6
  %s9 = scalar_select 0, %s8, %s6
  $region1: #{bert_class_forward.7} parent=0
    #allocation2 [shape = 'u8[1024]{0}', space=vmem, size = 0x400, scoped, tag = 'output window, operand 0, single buffered']
    #allocation3 [shape = 's32[1]{0}', space=sflag, size = 0x4, scoped, tag = 'scoped memory for bert_class_forward.7']
    %10 = vsyncpa [#allocation3], 0
    // Predicated region
    $region2: #{bert_class_forward.7} parent=1 // pred_check
      _
    $region3: #{bert_class_forward.7} parent=1 // pred_check_branch
      %12 = sbr.rel (0) target = $region5
    $region4: #{bert_class_forward.7} parent=1 // pred_region
      _
    $region5: #{bert_class_forward.7} parent=1 // pred_fallthru
      _
    // Predicated region
    $region6: #{bert_class_forward.7} parent=1 // pred_check
      _
    $region7: #{bert_class_forward.7} parent=1 // pred_check_branch
      %14 = sbr.rel (0) target = $region9
    $region8: #{bert_class_forward.7} parent=1 // pred_region
      _
    $region9: #{bert_class_forward.7} parent=1 // pred_fallthru
      _
    // Predicated region
    $region10: #{bert_class_forward.7} parent=1 // pred_check
      _
    $region11: #{bert_class_forward.7} parent=1 // pred_check_branch
      %16 = sbr.rel (0) target = $region13
    $region12: #{bert_class_forward.7} parent=1 // pred_region
      _
    $region13: #{bert_class_forward.7} parent=1 // pred_fallthru
      _
    // Predicated region
    $region14: #{bert_class_forward.7} parent=1 // pred_check
      _
    $region15: #{bert_class_forward.7} parent=1 // pred_check_branch
      %18 = sbr.rel (0) target = $region17
    $region16: #{bert_class_forward.7} parent=1 // pred_region
      _
    $region17: #{bert_class_forward.7} parent=1 // pred_fallthru
      _
    // Predicated region
    $region18: #{bert_class_forward.7} parent=1 // pred_check
      _
    $region19: #{bert_class_forward.7} parent=1 // pred_check_branch
      %20 = sbr.rel (0) target = $region21
    $region20: #{bert_class_forward.7} parent=1 // pred_region
      _
    $region21: #{bert_class_forward.7} parent=1 // pred_fallthru
      _
    %v22 = vld [vmem:[%s0] sm:$0x3]
    %v23 = vpack.c.bf16 %v22, %v22
    %v24 = vld [vmem:[%s1] sm:$0xf]
    %v25 = vld [vmem:[%s1 + $0x4] sm:$0xf]
    %v26 = vld [vmem:[%s1 + $0x8] sm:$0xf]
    %v27 = vld [vmem:[%s1 + $0xc] sm:$0xf]
    %v28 = vld [vmem:[%s2] sm:$0x1]
    %v30 = vlaneseq
    %v31 = vshrl.u32 %v30, 7
    %v32 = vsub.s32 0, %v31
    %v33 = vrot.slane %v28, %v32
    %v39 = vunpack.c.l.b16 %v24
    %v40 = vunpack.c.l.b16 %v25
    %v41 = vunpack.c.l.b16 %v26
    %v42 = vunpack.c.l.b16 %v27
    %v43 = vpack.c.b16 %v40, %v39
    %v44 = vpack.c.b16 %v42, %v41
    %vm47 = vcmask 261120
    %v49 = vsel %vm47, %v23, 0
    %51 = vmatprep.subr.bf16.mxu0 0
    %52 = vmatpush1.bf16.msra.mxu0 0
    %53 = vmatprep.subr.bf16.mxu0 0
    %54 = vmatpush1.bf16.msra.mxu0 0
    %55 = vmatprep.subr.bf16.mxu0 0
    %56 = vmatpush1.bf16.msra.mxu0 0
    %57 = vmatprep.subr.bf16.mxu0 0
    %58 = vmatpush1.bf16.msra.mxu0 0
    %59 = vmatprep.subr.bf16.mxu0 0
    %60 = vmatpush1.bf16.msra.mxu0 0
    %61 = vmatprep.subr.bf16.mxu0 0
    %62 = vmatpush1.bf16.msra.mxu0 0
    %63 = vmatprep.subr.bf16.mxu0 0
    %64 = vmatpush1.bf16.msra.mxu0 %v44
    %65 = vmatprep.subr.bf16.mxu0 0
    %66 = vmatpush1.bf16.msra.mxu0 %v43
    %67 = vmatprep.subr.bf16.mxu0 0
    %68 = vmatpush2.bf16.msra.mxu0 0
    %69 = vmatprep.subr.bf16.mxu0 0
    %70 = vmatpush2.bf16.msra.mxu0 0
    %71 = vmatprep.subr.bf16.mxu0 0
    %72 = vmatpush2.bf16.msra.mxu0 0
    %73 = vmatprep.subr.bf16.mxu0 0
    %74 = vmatpush2.bf16.msra.mxu0 0
    %75 = vmatprep.subr.bf16.mxu0 0
    %76 = vmatpush2.bf16.msra.mxu0 0
    %77 = vmatprep.subr.bf16.mxu0 0
    %78 = vmatpush2.bf16.msra.mxu0 0
    %79 = vmatprep.subr.bf16.mxu0 0
    %80 = vmatpush2.bf16.msra.mxu0 0
    %81 = vmatprep.subr.bf16.mxu0 0
    %82 = vmatpush2.bf16.msra.mxu0 0
    %83 = vmatprep.mubr.bf16.mxu0 0
    %84 = vmatmul.mubr.bf16.gmra.mxu0 %v49
    %v85 = vpop.f32.mrf.mxu0
    %v86 = vadd.f32 %v33, %v85
    %v87 = vpop.f32.mrf.mxu0
    %v88 = vpop.f32.mrf.mxu0
    %v89 = vpop.f32.mrf.mxu0
    %90 = vdwg.mxu0
    %v91 = vtanh.pop %v86
    %v92 = vpack.c.bf16 %v91, %v91
    %v93 = vld [vmem:[%s3] sm:$0xf]
    %v94 = vld [vmem:[%s3 + $0x4] sm:$0xf]
    %v95 = vld [vmem:[%s3 + $0x8] sm:$0xf]
    %v96 = vld [vmem:[%s3 + $0xc] sm:$0xf]
    %v97 = vld [vmem:[%s4] sm:$0x1]
    %v99 = vlaneseq
    %v100 = vshrl.u32 %v99, 7
    %v101 = vsub.s32 0, %v100
    %v102 = vrot.slane %v97, %v101
    %v108 = vunpack.c.l.b16 %v93
    %v109 = vunpack.c.l.b16 %v94
    %v110 = vunpack.c.l.b16 %v95
    %v111 = vunpack.c.l.b16 %v96
    %v112 = vpack.c.b16 %v109, %v108
    %v113 = vpack.c.b16 %v111, %v110
    %v117 = vsel %vm47, %v92, 0
    %119 = vmatprep.subr.bf16.mxu0 0
    %120 = vmatpush1.bf16.msra.mxu0 0
    %121 = vmatprep.subr.bf16.mxu0 0
    %122 = vmatpush1.bf16.msra.mxu0 0
    %123 = vmatprep.subr.bf16.mxu0 0
    %124 = vmatpush1.bf16.msra.mxu0 0
    %125 = vmatprep.subr.bf16.mxu0 0
    %126 = vmatpush1.bf16.msra.mxu0 0
    %127 = vmatprep.subr.bf16.mxu0 0
    %128 = vmatpush1.bf16.msra.mxu0 0
    %129 = vmatprep.subr.bf16.mxu0 0
    %130 = vmatpush1.bf16.msra.mxu0 0
    %131 = vmatprep.subr.bf16.mxu0 0
    %132 = vmatpush1.bf16.msra.mxu0 %v113
    %133 = vmatprep.subr.bf16.mxu0 0
    %134 = vmatpush1.bf16.msra.mxu0 %v112
    %135 = vmatprep.subr.bf16.mxu0 0
    %136 = vmatpush2.bf16.msra.mxu0 0
    %137 = vmatprep.subr.bf16.mxu0 0
    %138 = vmatpush2.bf16.msra.mxu0 0
    %139 = vmatprep.subr.bf16.mxu0 0
    %140 = vmatpush2.bf16.msra.mxu0 0
    %141 = vmatprep.subr.bf16.mxu0 0
    %142 = vmatpush2.bf16.msra.mxu0 0
    %143 = vmatprep.subr.bf16.mxu0 0
    %144 = vmatpush2.bf16.msra.mxu0 0
    %145 = vmatprep.subr.bf16.mxu0 0
    %146 = vmatpush2.bf16.msra.mxu0 0
    %147 = vmatprep.subr.bf16.mxu0 0
    %148 = vmatpush2.bf16.msra.mxu0 0
    %149 = vmatprep.subr.bf16.mxu0 0
    %150 = vmatpush2.bf16.msra.mxu0 0
    %151 = vmatprep.mubr.bf16.mxu0 0
    %152 = vmatmul.mubr.bf16.gmra.mxu0 %v117
    %v153 = vpop.f32.mrf.mxu0
    %v154 = vadd.f32 %v102, %v153
    %v155 = vpop.f32.mrf.mxu0
    %v156 = vpop.f32.mrf.mxu0
    %v157 = vpop.f32.mrf.mxu0
    %158 = vdwg.mxu0
    %159 = vst [vmem:[#allocation2] sm:$0x3] %v154
    // Predicated region
    $region22: #{bert_class_forward.7} parent=1 // pred_check
      _
    $region23: #{bert_class_forward.7} parent=1 // pred_check_branch
      %161 = sbr.rel (0) target = $region25
    $region24: #{bert_class_forward.7} parent=1 // pred_region
      %s163 = ssub.s32 32, 32
      %164 = vsyncadd [#allocation3], %s163
      %s166 = sshll.u32 [#allocation2], 4
      %s167 = int_to_ptr.vmem [resolvable:$true] %s166
      %169 = dma.vmem_to_hbm [thread:$0]  %s167, 32, %s5, [#allocation3]
    $region25: #{bert_class_forward.7} parent=1 // pred_fallthru
      _
    // Predicated region
    $region26: #{bert_class_forward.7} parent=1 // pred_check
      _
    $region27: #{bert_class_forward.7} parent=1 // pred_check_branch
      %171 = sbr.rel (0) target = $region29
    $region28: #{bert_class_forward.7} parent=1 // pred_region
      %172 = dma.done [#allocation3], 32
    $region29: #{bert_class_forward.7} parent=1 // pred_fallthru
      _
    %173 = vsyncpa [#allocation3], 1

// kernel: bert_class_forward.5
$region0: #{bert_class_forward.5}
  #allocation0 [shape = 'u32[]', space=smem, size = 0x4, offset = 0x4, fixed_abs, tag = 'smem constant byte address 0x4 - core index']
  #allocation1 [shape = 'u32[144,128]{1,0:T(1,128)}', space=vmem, size = 0x12000, scoped, tag = 'internal scratch']
  #allocation2 [shape = 'bf16[8,96]{1,0:T(8,128)(2,1)}', space=vmem, size = 0x800, scoped, tag = 'scratch operand']
  #allocation3 [shape = 'bf16[8,32]{1,0:T(8,128)(2,1)}', space=vmem, size = 0x800, scoped, tag = 'scratch operand']
  %s0 = inlined_call_operand.vmem [shape: f32[2,1,8], index: 0, kind: input, shape index: {}]
  %s1 = inlined_call_operand.vmem [shape: f32[16,32], index: 1, kind: input, shape index: {}]
  %s2 = inlined_call_operand.vmem [shape: bf16[32,96], index: 2, kind: input, shape index: {}]
  %s3 = inlined_call_operand.vmem [shape: f32[1,96], index: 3, kind: input, shape index: {}]
  %s4 = inlined_call_operand.vmem [shape: bf16[32,32], index: 4, kind: input, shape index: {}]
  %s5 = inlined_call_operand.vmem [shape: bf16[32,128], index: 5, kind: input, shape index: {}]
  %s6 = inlined_call_operand.vmem [shape: f32[1,128], index: 6, kind: input, shape index: {}]
  %s7 = inlined_call_operand.vmem [shape: bf16[128,32], index: 7, kind: input, shape index: {}]
  %s8 = inlined_call_operand.vmem [shape: f32[6,32], index: 8, kind: input, shape index: {}]
  %s9 = inlined_call_operand.vmem [shape: f32[16,32], index: 9, kind: output, shape index: {}]
  %s10 = sld [smem:[#allocation0]]
  $region69: #{bert_class_forward.5} parent=0
    _
  %s12 = ssub.s32 1, %s10
  %s13 = scalar_select 0, %s12, %s10
  loop: start=0, step=1, limit=4
  $region2: #{bert_class_forward.5} parent=0 // loop_pre_header
    _
  $region3: #{bert_class_forward.5} parent=0 // loop_header
    %s15 = sphi 0, %s19
    %p16 = scmp.ge.s32.totalorder %s15, 4
    %s25 = sphi 0, %s27
    %s28 = sphi 0, %s25
    %s29 = sphi 0, %s28
    %s45 = sphi 0, %s29
    %s51 = sphi 0, %s53
    %s54 = sphi 0, %s51
    %s55 = sphi 0, %s54
    %s71 = sphi 0, %s55
    %s75 = sphi 0, %s75
    %s77 = sphi 0, %s75
    %s78 = sphi 0, %s77
    %s92 = sphi 0, %s78
    %s96 = sphi 0, %s96
    %s98 = sphi 0, %s96
    %s99 = sphi 0, %s98
    %s113 = sphi 0, %s99
    %s117 = sphi 0, %s117
    %s119 = sphi 0, %s117
    %s120 = sphi 0, %s119
    %s134 = sphi 0, %s120
    %s138 = sphi 0, %s138
    %s140 = sphi 0, %s138
    %s141 = sphi 0, %s140
    %s155 = sphi 0, %s141
    %s159 = sphi 0, %s159
    %s161 = sphi 0, %s159
    %s162 = sphi 0, %s161
    %s176 = sphi 0, %s162
    %s180 = sphi 0, %s180
    %s182 = sphi 0, %s180
    %s183 = sphi 0, %s182
    %s197 = sphi 0, %s183
    %s201 = sphi 0, %s201
    %s203 = sphi 0, %s201
    %s204 = sphi 0, %s203
    %s218 = sphi 0, %s204
    %s224 = sphi 0, %s226
    %s227 = sphi 0, %s224
    %s228 = sphi 0, %s227
    %s244 = sphi 0, %s228
  $region4: #{bert_class_forward.5} parent=0 // loop_header_branch
    %18 = sbr.rel (%p16) target = $region8
  $region5: #{bert_class_forward.5} parent=0 // loop_body
    %s20 = ssub.s32 %s15, 1
    %s21 = ssub.s32 %s15, 2
    %s22 = sadd.s32 %s15, 1
    %s23 = ssub.s32 %s15, %s22
    %p24 = scmp.eq.s32.totalorder %s23, 0
    %s26 = sadd.s32 %s25, 1
    %s27 = scalar_select %p24, %s25, %s26
    %p30 = pneg %p24
    %p31 = scmp.eq.s32.totalorder %s15, 1
    %p32 = por %p30, %p31
    %p33 = scmp.ne.s32.totalorder %s25, %s28
    %p34 = scmp.eq.s32.totalorder %s15, 0
    %p35 = por %p33, %p34
    %p36 = scmp.ne.s32.totalorder %s25, %s28
    %p37 = scmp.eq.s32.totalorder %s20, 1
    %p38 = por %p36, %p37
    %p39 = scmp.ne.s32.totalorder %s28, %s29
    %p40 = scmp.eq.s32.totalorder %s20, 0
    %p41 = por %p39, %p40
    %p42 = scmp.ne.s32.totalorder %s28, %s29
    %p43 = scmp.eq.s32.totalorder %s21, 1
    %p44 = por %p42, %p43
    %p46 = scmp.ne.s32.totalorder %s29, %s45
    %p47 = scmp.eq.s32.totalorder %s21, 0
    %p48 = por %p46, %p47
    %s49 = ssub.s32 %s15, %s22
    %p50 = scmp.eq.s32.totalorder %s49, 0
    %s52 = sadd.s32 %s51, 1
    %s53 = scalar_select %p50, %s51, %s52
    %p56 = pneg %p50
    %p57 = scmp.eq.s32.totalorder %s15, 1
    %p58 = por %p56, %p57
    %p59 = scmp.ne.s32.totalorder %s51, %s54
    %p60 = scmp.eq.s32.totalorder %s15, 0
    %p61 = por %p59, %p60
    %p62 = scmp.ne.s32.totalorder %s51, %s54
    %p63 = scmp.eq.s32.totalorder %s20, 1
    %p64 = por %p62, %p63
    %p65 = scmp.ne.s32.totalorder %s54, %s55
    %p66 = scmp.eq.s32.totalorder %s20, 0
    %p67 = por %p65, %p66
    %p68 = scmp.ne.s32.totalorder %s54, %s55
    %p69 = scmp.eq.s32.totalorder %s21, 1
    %p70 = por %p68, %p69
    %p72 = scmp.ne.s32.totalorder %s55, %s71
    %p73 = scmp.eq.s32.totalorder %s21, 0
    %p74 = por %p72, %p73
    %s76 = sadd.s32 %s75, 1
    %p79 = scmp.eq.s32.totalorder %s15, 1
    %p80 = scmp.ne.s32.totalorder %s75, %s77
    %p81 = scmp.eq.s32.totalorder %s15, 0
    %p82 = por %p80, %p81
    %p83 = scmp.ne.s32.totalorder %s75, %s77
    %p84 = scmp.eq.s32.totalorder %s20, 1
    %p85 = por %p83, %p84
    %p86 = scmp.ne.s32.totalorder %s77, %s78
    %p87 = scmp.eq.s32.totalorder %s20, 0
    %p88 = por %p86, %p87
    %p89 = scmp.ne.s32.totalorder %s77, %s78
    %p90 = scmp.eq.s32.totalorder %s21, 1
    %p91 = por %p89, %p90
    %p93 = scmp.ne.s32.totalorder %s78, %s92
    %p94 = scmp.eq.s32.totalorder %s21, 0
    %p95 = por %p93, %p94
    %s97 = sadd.s32 %s96, 1
    %p100 = scmp.eq.s32.totalorder %s15, 1
    %p101 = scmp.ne.s32.totalorder %s96, %s98
    %p102 = scmp.eq.s32.totalorder %s15, 0
    %p103 = por %p101, %p102
    %p104 = scmp.ne.s32.totalorder %s96, %s98
    %p105 = scmp.eq.s32.totalorder %s20, 1
    %p106 = por %p104, %p105
    %p107 = scmp.ne.s32.totalorder %s98, %s99
    %p108 = scmp.eq.s32.totalorder %s20, 0
    %p109 = por %p107, %p108
    %p110 = scmp.ne.s32.totalorder %s98, %s99
    %p111 = scmp.eq.s32.totalorder %s21, 1
    %p112 = por %p110, %p111
    %p114 = scmp.ne.s32.totalorder %s99, %s113
    %p115 = scmp.eq.s32.totalorder %s21, 0
    %p116 = por %p114, %p115
    %s118 = sadd.s32 %s117, 1
    %p121 = scmp.eq.s32.totalorder %s15, 1
    %p122 = scmp.ne.s32.totalorder %s117, %s119
    %p123 = scmp.eq.s32.totalorder %s15, 0
    %p124 = por %p122, %p123
    %p125 = scmp.ne.s32.totalorder %s117, %s119
    %p126 = scmp.eq.s32.totalorder %s20, 1
    %p127 = por %p125, %p126
    %p128 = scmp.ne.s32.totalorder %s119, %s120
    %p129 = scmp.eq.s32.totalorder %s20, 0
    %p130 = por %p128, %p129
    %p131 = scmp.ne.s32.totalorder %s119, %s120
    %p132 = scmp.eq.s32.totalorder %s21, 1
    %p133 = por %p131, %p132
    %p135 = scmp.ne.s32.totalorder %s120, %s134
    %p136 = scmp.eq.s32.totalorder %s21, 0
    %p137 = por %p135, %p136
    %s139 = sadd.s32 %s138, 1
    %p142 = scmp.eq.s32.totalorder %s15, 1
    %p143 = scmp.ne.s32.totalorder %s138, %s140
    %p144 = scmp.eq.s32.totalorder %s15, 0
    %p145 = por %p143, %p144
    %p146 = scmp.ne.s32.totalorder %s138, %s140
    %p147 = scmp.eq.s32.totalorder %s20, 1
    %p148 = por %p146, %p147
    %p149 = scmp.ne.s32.totalorder %s140, %s141
    %p150 = scmp.eq.s32.totalorder %s20, 0
    %p151 = por %p149, %p150
    %p152 = scmp.ne.s32.totalorder %s140, %s141
    %p153 = scmp.eq.s32.totalorder %s21, 1
    %p154 = por %p152, %p153
    %p156 = scmp.ne.s32.totalorder %s141, %s155
    %p157 = scmp.eq.s32.totalorder %s21, 0
    %p158 = por %p156, %p157
    %s160 = sadd.s32 %s159, 1
    %p163 = scmp.eq.s32.totalorder %s15, 1
    %p164 = scmp.ne.s32.totalorder %s159, %s161
    %p165 = scmp.eq.s32.totalorder %s15, 0
    %p166 = por %p164, %p165
    %p167 = scmp.ne.s32.totalorder %s159, %s161
    %p168 = scmp.eq.s32.totalorder %s20, 1
    %p169 = por %p167, %p168
    %p170 = scmp.ne.s32.totalorder %s161, %s162
    %p171 = scmp.eq.s32.totalorder %s20, 0
    %p172 = por %p170, %p171
    %p173 = scmp.ne.s32.totalorder %s161, %s162
    %p174 = scmp.eq.s32.totalorder %s21, 1
    %p175 = por %p173, %p174
    %p177 = scmp.ne.s32.totalorder %s162, %s176
    %p178 = scmp.eq.s32.totalorder %s21, 0
    %p179 = por %p177, %p178
    %s181 = sadd.s32 %s180, 1
    %p184 = scmp.eq.s32.totalorder %s15, 1
    %p185 = scmp.ne.s32.totalorder %s180, %s182
    %p186 = scmp.eq.s32.totalorder %s15, 0
    %p187 = por %p185, %p186
    %p188 = scmp.ne.s32.totalorder %s180, %s182
    %p189 = scmp.eq.s32.totalorder %s20, 1
    %p190 = por %p188, %p189
    %p191 = scmp.ne.s32.totalorder %s182, %s183
    %p192 = scmp.eq.s32.totalorder %s20, 0
    %p193 = por %p191, %p192
    %p194 = scmp.ne.s32.totalorder %s182, %s183
    %p195 = scmp.eq.s32.totalorder %s21, 1
    %p196 = por %p194, %p195
    %p198 = scmp.ne.s32.totalorder %s183, %s197
    %p199 = scmp.eq.s32.totalorder %s21, 0
    %p200 = por %p198, %p199
    %s202 = sadd.s32 %s201, 1
    %p205 = scmp.eq.s32.totalorder %s15, 1
    %p206 = scmp.ne.s32.totalorder %s201, %s203
    %p207 = scmp.eq.s32.totalorder %s15, 0
    %p208 = por %p206, %p207
    %p209 = scmp.ne.s32.totalorder %s201, %s203
    %p210 = scmp.eq.s32.totalorder %s20, 1
    %p211 = por %p209, %p210
    %p212 = scmp.ne.s32.totalorder %s203, %s204
    %p213 = scmp.eq.s32.totalorder %s20, 0
    %p214 = por %p212, %p213
    %p215 = scmp.ne.s32.totalorder %s203, %s204
    %p216 = scmp.eq.s32.totalorder %s21, 1
    %p217 = por %p215, %p216
    %p219 = scmp.ne.s32.totalorder %s204, %s218
    %p220 = scmp.eq.s32.totalorder %s21, 0
    %p221 = por %p219, %p220
    %s222 = ssub.s32 %s15, %s22
    %p223 = scmp.eq.s32.totalorder %s222, 0
    %s225 = sadd.s32 %s224, 1
    %s226 = scalar_select %p223, %s224, %s225
    %p229 = pneg %p223
    %p230 = scmp.eq.s32.totalorder %s15, 1
    %p231 = por %p229, %p230
    %p232 = scmp.ne.s32.totalorder %s224, %s227
    %p233 = scmp.eq.s32.totalorder %s15, 0
    %p234 = por %p232, %p233
    %p235 = scmp.ne.s32.totalorder %s224, %s227
    %p236 = scmp.eq.s32.totalorder %s20, 1
    %p237 = por %p235, %p236
    %p238 = scmp.ne.s32.totalorder %s227, %s228
    %p239 = scmp.eq.s32.totalorder %s20, 0
    %p240 = por %p238, %p239
    %p241 = scmp.ne.s32.totalorder %s227, %s228
    %p242 = scmp.eq.s32.totalorder %s21, 1
    %p243 = por %p241, %p242
    %p245 = scmp.ne.s32.totalorder %s228, %s244
    %p246 = scmp.eq.s32.totalorder %s21, 0
    %p247 = por %p245, %p246
    %p248 = scmp.le.s32.totalorder 1, %s15
    %p249 = scmp.lt.s32.totalorder %s15, 3
    %p250 = pnand %p248, %p249
    %p251 = pneg %p250
    // Predicated region
    $region9: #{bert_class_forward.5} parent=5 // pred_check
      _
    $region10: #{bert_class_forward.5} parent=5 // pred_check_branch
      %253 = sbr.rel (%p250) target = $region12
    $region11: #{bert_class_forward.5} parent=5 // pred_region
      %s254 = ssub.s32 %s15, 1
      // Predicated region
      $region13: #{bert_class_forward.5} parent=11 // pred_check
        %p255 = pneg %p88
      $region14: #{bert_class_forward.5} parent=11 // pred_check_branch
        %257 = sbr.rel (%p255) target = $region16
      $region15: #{bert_class_forward.5} parent=11 // pred_region
        _
      $region16: #{bert_class_forward.5} parent=11 // pred_fallthru
        _
      // Predicated region
      $region17: #{bert_class_forward.5} parent=11 // pred_check
        %p258 = pneg %p109
      $region18: #{bert_class_forward.5} parent=11 // pred_check_branch
        %260 = sbr.rel (%p258) target = $region20
      $region19: #{bert_class_forward.5} parent=11 // pred_region
        _
      $region20: #{bert_class_forward.5} parent=11 // pred_fallthru
        _
      // Predicated region
      $region21: #{bert_class_forward.5} parent=11 // pred_check
        %p261 = pneg %p130
      $region22: #{bert_class_forward.5} parent=11 // pred_check_branch
        %263 = sbr.rel (%p261) target = $region24
      $region23: #{bert_class_forward.5} parent=11 // pred_region
        _
      $region24: #{bert_class_forward.5} parent=11 // pred_fallthru
        _
      // Predicated region
      $region25: #{bert_class_forward.5} parent=11 // pred_check
        %p264 = pneg %p151
      $region26: #{bert_class_forward.5} parent=11 // pred_check_branch
        %266 = sbr.rel (%p264) target = $region28
      $region27: #{bert_class_forward.5} parent=11 // pred_region
        _
      $region28: #{bert_class_forward.5} parent=11 // pred_fallthru
        _
      // Predicated region
      $region29: #{bert_class_forward.5} parent=11 // pred_check
        %p267 = pneg %p172
      $region30: #{bert_class_forward.5} parent=11 // pred_check_branch
        %269 = sbr.rel (%p267) target = $region32
      $region31: #{bert_class_forward.5} parent=11 // pred_region
        _
      $region32: #{bert_class_forward.5} parent=11 // pred_fallthru
        _
      // Predicated region
      $region33: #{bert_class_forward.5} parent=11 // pred_check
        %p270 = pneg %p193
      $region34: #{bert_class_forward.5} parent=11 // pred_check_branch
        %272 = sbr.rel (%p270) target = $region36
      $region35: #{bert_class_forward.5} parent=11 // pred_region
        _
      $region36: #{bert_class_forward.5} parent=11 // pred_fallthru
        _
      // Predicated region
      $region37: #{bert_class_forward.5} parent=11 // pred_check
        %p273 = pneg %p214
      $region38: #{bert_class_forward.5} parent=11 // pred_check_branch
        %275 = sbr.rel (%p273) target = $region40
      $region39: #{bert_class_forward.5} parent=11 // pred_region
        _
      $region40: #{bert_class_forward.5} parent=11 // pred_fallthru
        _
    $region12: #{bert_class_forward.5} parent=5 // pred_fallthru
      _
    %p276 = scmp.lt.s32.totalorder %s15, 2
    // Predicated region
    $region41: #{bert_class_forward.5} parent=5 // pred_check
      %p277 = pneg %p276
    $region42: #{bert_class_forward.5} parent=5 // pred_check_branch
      %279 = sbr.rel (%p277) target = $region44
    $region43: #{bert_class_forward.5} parent=5 // pred_region
      // Predicated region
      $region45: #{bert_class_forward.5} parent=43 // pred_check
        %p280 = pneg %p35
      $region46: #{bert_class_forward.5} parent=43 // pred_check_branch
        %282 = sbr.rel (%p280) target = $region48
      $region47: #{bert_class_forward.5} parent=43 // pred_region
        %p283 = scmp.lt.s32.totalorder %s15, 1
        %s284 = scalar_select %p283, %s15, 1
        %s285 = scalar_lea.vmem %s0, %s284
      $region48: #{bert_class_forward.5} parent=43 // pred_fallthru
        _
      // Predicated region
      $region49: #{bert_class_forward.5} parent=43 // pred_check
        %p286 = pneg %p61
      $region50: #{bert_class_forward.5} parent=43 // pred_check_branch
        %288 = sbr.rel (%p286) target = $region52
      $region51: #{bert_class_forward.5} parent=43 // pred_region
        %p289 = scmp.lt.s32.totalorder %s15, 1
        %s290 = scalar_select %p289, %s15, 1
        %s291 = smul.addr %s290, 8
        %s292 = scalar_lea.vmem %s1, %s291
      $region52: #{bert_class_forward.5} parent=43 // pred_fallthru
        _
    $region44: #{bert_class_forward.5} parent=5 // pred_fallthru
      _
    %p293 = scmp.le.s32.totalorder 1, %s15
    %p294 = scmp.lt.s32.totalorder %s15, 3
    %p295 = pnand %p293, %p294
    %p296 = pneg %p295
    // Predicated region
    $region53: #{bert_class_forward.5} parent=5 // pred_check
      _
    $region54: #{bert_class_forward.5} parent=5 // pred_check_branch
      %298 = sbr.rel (%p295) target = $region56
    $region55: #{bert_class_forward.5} parent=5 // pred_region
      %s299 = ssub.s32 %s15, 1
      %p300 = scmp.lt.s32.totalorder %s20, 1
      %s301 = scalar_select %p300, %s20, 1
      %s302 = scalar_lea.vmem %s0, %s301
      %p303 = pneg %p41
      %p304 = pneg %p38
      %p305 = scmp.lt.s32.totalorder %s20, 1
      %s306 = scalar_select %p305, %s20, 1
      %s307 = smul.addr %s306, 8
      %s308 = scalar_lea.vmem %s1, %s307
      %p309 = pneg %p67
      %p310 = pneg %p64
      %p311 = pneg %p88
      %p312 = pneg %p85
      %p313 = pneg %p109
      %p314 = pneg %p106
      %p315 = pneg %p130
      %p316 = pneg %p127
      %p317 = pneg %p151
      %p318 = pneg %p148
      %p319 = pneg %p172
      %p320 = pneg %p169
      %p321 = pneg %p193
      %p322 = pneg %p190
      %p323 = pneg %p214
      %p324 = pneg %p211
      %p325 = pneg %p240
      %p326 = pneg %p237
      %p327 = scmp.lt.s32.totalorder %s20, 1
      %s328 = scalar_select %p327, %s20, 1
      %s329 = smul.addr %s328, 8
      %s330 = scalar_lea.vmem %s9, %s329
      %p331 = scmp.lt.s32.totalorder %s20, 1
      %s332 = scalar_select %p331, %s20, 1
      %s333 = scalar_lea.vmem %s0, %s332
      %p334 = scmp.lt.s32.totalorder %s20, 1
      %s335 = scalar_select %p334, %s20, 1
      %s336 = smul.addr %s335, 8
      %s337 = scalar_lea.vmem %s1, %s336
      %p338 = scmp.lt.s32.totalorder %s20, 1
      %s339 = scalar_select %p338, %s20, 1
      %s340 = smul.addr %s339, 8
      %s341 = scalar_lea.vmem %s9, %s340
      %v343 = vld [vmem:[%s337] sm:$0xff]
      %v344 = vld [vmem:[%s333] sm:$0x1]
      %v345 = vsub.f32 1.0, %v344
      %v346 = vmul.f32 %v345, -1e+09
      %v347 = vld [vmem:[%s8] sm:$0x1]
      %v348 = vld [vmem:[%s8 + $0x1] sm:$0x1]
      %v349 = vld [vmem:[%s8 + $0x2] sm:$0x1]
      %v350 = vld [vmem:[%s8 + $0x3] sm:$0x1]
      %v351 = vld [vmem:[%s8 + $0x4] sm:$0x1]
      %v352 = vld [vmem:[%s8 + $0x5] sm:$0x1]
      %v353 = vpack.c.bf16 %v343, %v343
      %v354 = vld [vmem:[%s2] sm:$0xf]
      %v355 = vld [vmem:[%s2 + $0x4] sm:$0xf]
      %v356 = vld [vmem:[%s2 + $0x8] sm:$0xf]
      %v357 = vld [vmem:[%s2 + $0xc] sm:$0xf]
      %v358 = vld [vmem:[%s3] sm:$0x1]
      %v360 = vlaneseq
      %v361 = vshrl.u32 %v360, 7
      %v362 = vsub.s32 0, %v361
      %v363 = vrot.slane %v358, %v362
      %v369 = vunpack.c.l.b16 %v354
      %v370 = vunpack.c.l.b16 %v355
      %v371 = vunpack.c.l.b16 %v356
      %v372 = vunpack.c.l.b16 %v357
      %v373 = vpack.c.b16 %v370, %v369
      %v374 = vpack.c.b16 %v372, %v371
      %vm377 = vcmask 261120
      %v379 = vsel %vm377, %v353, 0
      %381 = vmatprep.subr.bf16.mxu0 0
      %382 = vmatpush1.bf16.msra.mxu0 0
      %383 = vmatprep.subr.bf16.mxu0 0
      %384 = vmatpush1.bf16.msra.mxu0 0
      %385 = vmatprep.subr.bf16.mxu0 0
      %386 = vmatpush1.bf16.msra.mxu0 0
      %387 = vmatprep.subr.bf16.mxu0 0
      %388 = vmatpush1.bf16.msra.mxu0 0
      %389 = vmatprep.subr.bf16.mxu0 0
      %390 = vmatpush1.bf16.msra.mxu0 0
      %391 = vmatprep.subr.bf16.mxu0 0
      %392 = vmatpush1.bf16.msra.mxu0 0
      %393 = vmatprep.subr.bf16.mxu0 0
      %394 = vmatpush1.bf16.msra.mxu0 %v374
      %395 = vmatprep.subr.bf16.mxu0 0
      %396 = vmatpush1.bf16.msra.mxu0 %v373
      %397 = vmatprep.subr.bf16.mxu0 0
      %398 = vmatpush2.bf16.msra.mxu0 0
      %399 = vmatprep.subr.bf16.mxu0 0
      %400 = vmatpush2.bf16.msra.mxu0 0
      %401 = vmatprep.subr.bf16.mxu0 0
      %402 = vmatpush2.bf16.msra.mxu0 0
      %403 = vmatprep.subr.bf16.mxu0 0
      %404 = vmatpush2.bf16.msra.mxu0 0
      %405 = vmatprep.subr.bf16.mxu0 0
      %406 = vmatpush2.bf16.msra.mxu0 0
      %407 = vmatprep.subr.bf16.mxu0 0
      %408 = vmatpush2.bf16.msra.mxu0 0
      %409 = vmatprep.subr.bf16.mxu0 0
      %410 = vmatpush2.bf16.msra.mxu0 0
      %411 = vmatprep.subr.bf16.mxu0 0
      %412 = vmatpush2.bf16.msra.mxu0 0
      %413 = vmatprep.mubr.bf16.mxu0 0
      %414 = vmatmul.mubr.bf16.gmra.mxu0 %v379
      %v415 = vpop.f32.mrf.mxu0
      %v416 = vadd.f32 %v363, %v415
      %v417 = vpop.f32.mrf.mxu0
      %v418 = vpop.f32.mrf.mxu0
      %v419 = vpop.f32.mrf.mxu0
      %420 = vdwg.mxu0
      %v421 = vpack.c.bf16 %v416, %v416
      %vm422 = vcmask 781312
      %423 = vst.msk [vmem:[#allocation2] sm:$0xf] %vm422, %v421
      %v424 = vld [vmem:[#allocation2] sm:$0xf]
      %v426 = vlaneseq
      %v427 = vshrl.u32 %v426, 7
      %v428 = vsub.s32 0, %v427
      %v429 = vrot.slane %v346, %v428
      %v432 = vunpack.c.l.b16 %v424
      %v433 = vpack.c.b16 %v432, %v432
      %434 = vrot.lane.b32.xlu0 %v433, 96
      %v435 = vpop.permute.xlu0 %434
      %vm436 = vcmask 64512
      %v438 = vsel %vm436, %v424, 0
      %v441 = vsel %vm436, %v435, 0
      %443 = vmatprep.subr.bf16.mxu0 0
      %444 = vmatpush1.bf16.xpose.msra.mxu0 0
      %445 = vmatprep.subr.bf16.mxu0 0
      %446 = vmatpush1.bf16.xpose.msra.mxu0 0
      %447 = vmatprep.subr.bf16.mxu0 0
      %448 = vmatpush1.bf16.xpose.msra.mxu0 0
      %449 = vmatprep.subr.bf16.mxu0 0
      %450 = vmatpush1.bf16.xpose.msra.mxu0 0
      %451 = vmatprep.subr.bf16.mxu0 0
      %452 = vmatpush1.bf16.xpose.msra.mxu0 0
      %453 = vmatprep.subr.bf16.mxu0 0
      %454 = vmatpush1.bf16.xpose.msra.mxu0 0
      %455 = vmatprep.subr.bf16.mxu0 0
      %456 = vmatpush1.bf16.xpose.msra.mxu0 0
      %457 = vmatprep.subr.bf16.mxu0 0
      %458 = vmatpush1.bf16.xpose.msra.mxu0 %v441
      %459 = vmatprep.subr.bf16.mxu0 0
      %460 = vmatpush2.bf16.xpose.msra.mxu0 0
      %461 = vmatprep.subr.bf16.mxu0 0
      %462 = vmatpush2.bf16.xpose.msra.mxu0 0
      %463 = vmatprep.subr.bf16.mxu0 0
      %464 = vmatpush2.bf16.xpose.msra.mxu0 0
      %465 = vmatprep.subr.bf16.mxu0 0
      %466 = vmatpush2.bf16.xpose.msra.mxu0 0
      %467 = vmatprep.subr.bf16.mxu0 0
      %468 = vmatpush2.bf16.xpose.msra.mxu0 0
      %469 = vmatprep.subr.bf16.mxu0 0
      %470 = vmatpush2.bf16.xpose.msra.mxu0 0
      %471 = vmatprep.subr.bf16.mxu0 0
      %472 = vmatpush2.bf16.xpose.msra.mxu0 0
      %473 = vmatprep.subr.bf16.mxu0 0
      %474 = vmatpush2.bf16.xpose.msra.mxu0 0
      %475 = vmatprep.mubr.bf16.mxu0 0
      %476 = vmatmul.mubr.bf16.gmra.mxu0 %v438
      %v477 = vpop.f32.mrf.mxu0
      %v478 = vadd.f32 %v429, %v477
      %v479 = vpop.f32.mrf.mxu0
      %v480 = vpop.f32.mrf.mxu0
      %v481 = vpop.f32.mrf.mxu0
      %482 = vdwg.mxu0
      %v483 = vsel %vm436, %v478, -inf
      %484 = vmax.xlane.f32.xlu0 %v483
      %v485 = vpop.xlane.xlu0 %484
      %v486 = vsub.f32 %v478, %v485
      %v487 = vmul.f32 %v486, 1.442695
      %v488 = vpow.pop %v487
      %v489 = vsel %vm436, %v488, 0.0
      %490 = vadd.xlane.f32.xlu0 %v489
      %v491 = vpop.xlane.xlu0 %490
      %v492 = vrcp.pop %v491
      %v493 = vmul.f32 %v488, %v492
      %v494 = vpack.c.bf16 %v493, %v493
      %495 = vrot.lane.b32.xlu0 %v433, 64
      %v496 = vpop.permute.xlu0 %495
      %v498 = vsel %vm436, %v494, 0
      %vm500 = vcmask 1043456
      %v502 = vsel %vm500, %v496, 0
      %504 = vmatprep.subr.bf16.mxu0 0
      %505 = vmatpush1.bf16.msra.mxu0 0
      %506 = vmatprep.subr.bf16.mxu0 0
      %507 = vmatpush1.bf16.msra.mxu0 0
      %508 = vmatprep.subr.bf16.mxu0 0
      %509 = vmatpush1.bf16.msra.mxu0 0
      %510 = vmatprep.subr.bf16.mxu0 0
      %511 = vmatpush1.bf16.msra.mxu0 0
      %512 = vmatprep.subr.bf16.mxu0 0
      %513 = vmatpush1.bf16.msra.mxu0 0
      %514 = vmatprep.subr.bf16.mxu0 0
      %515 = vmatpush1.bf16.msra.mxu0 0
      %516 = vmatprep.subr.bf16.mxu0 0
      %517 = vmatpush1.bf16.msra.mxu0 0
      %518 = vmatprep.subr.bf16.mxu0 0
      %519 = vmatpush1.bf16.msra.mxu0 %v502
      %520 = vmatprep.subr.bf16.mxu0 0
      %521 = vmatpush2.bf16.msra.mxu0 0
      %522 = vmatprep.subr.bf16.mxu0 0
      %523 = vmatpush2.bf16.msra.mxu0 0
      %524 = vmatprep.subr.bf16.mxu0 0
      %525 = vmatpush2.bf16.msra.mxu0 0
      %526 = vmatprep.subr.bf16.mxu0 0
      %527 = vmatpush2.bf16.msra.mxu0 0
      %528 = vmatprep.subr.bf16.mxu0 0
      %529 = vmatpush2.bf16.msra.mxu0 0
      %530 = vmatprep.subr.bf16.mxu0 0
      %531 = vmatpush2.bf16.msra.mxu0 0
      %532 = vmatprep.subr.bf16.mxu0 0
      %533 = vmatpush2.bf16.msra.mxu0 0
      %534 = vmatprep.subr.bf16.mxu0 0
      %535 = vmatpush2.bf16.msra.mxu0 0
      %536 = vmatprep.mubr.bf16.mxu0 0
      %537 = vmatmul.mubr.bf16.gmra.mxu0 %v498
      %v538 = vpop.f32.mrf.mxu0
      %v539 = vadd.f32 0.0, %v538
      %v540 = vpop.f32.mrf.mxu0
      %v541 = vpop.f32.mrf.mxu0
      %v542 = vpop.f32.mrf.mxu0
      %543 = vdwg.mxu0
      %v544 = vpack.c.bf16 %v539, %v539
      %vm545 = vcmask 60416
      %546 = vst.msk [vmem:[#allocation3] sm:$0xf] %vm545, %v544
      %v547 = vld [vmem:[#allocation2] sm:$0xf]
      %v549 = vunpack.c.l.b16 %v547
      %v550 = vpack.c.b16 %v549, %v549
      %551 = vrot.lane.b32.xlu0 %v550, 120
      %v552 = vpop.permute.xlu0 %551
      %553 = vrot.lane.b32.xlu0 %v550, 88
      %v554 = vpop.permute.xlu0 %553
      %v556 = vsel %vm436, %v552, 0
      %v559 = vsel %vm436, %v554, 0
      %561 = vmatprep.subr.bf16.mxu0 0
      %562 = vmatpush1.bf16.xpose.msra.mxu0 0
      %563 = vmatprep.subr.bf16.mxu0 0
      %564 = vmatpush1.bf16.xpose.msra.mxu0 0
      %565 = vmatprep.subr.bf16.mxu0 0
      %566 = vmatpush1.bf16.xpose.msra.mxu0 0
      %567 = vmatprep.subr.bf16.mxu0 0
      %568 = vmatpush1.bf16.xpose.msra.mxu0 0
      %569 = vmatprep.subr.bf16.mxu0 0
      %570 = vmatpush1.bf16.xpose.msra.mxu0 0
      %571 = vmatprep.subr.bf16.mxu0 0
      %572 = vmatpush1.bf16.xpose.msra.mxu0 0
      %573 = vmatprep.subr.bf16.mxu0 0
      %574 = vmatpush1.bf16.xpose.msra.mxu0 0
      %575 = vmatprep.subr.bf16.mxu0 0
      %576 = vmatpush1.bf16.xpose.msra.mxu0 %v559
      %577 = vmatprep.subr.bf16.mxu0 0
      %578 = vmatpush2.bf16.xpose.msra.mxu0 0
      %579 = vmatprep.subr.bf16.mxu0 0
      %580 = vmatpush2.bf16.xpose.msra.mxu0 0
      %581 = vmatprep.subr.bf16.mxu0 0
      %582 = vmatpush2.bf16.xpose.msra.mxu0 0
      %583 = vmatprep.subr.bf16.mxu0 0
      %584 = vmatpush2.bf16.xpose.msra.mxu0 0
      %585 = vmatprep.subr.bf16.mxu0 0
      %586 = vmatpush2.bf16.xpose.msra.mxu0 0
      %587 = vmatprep.subr.bf16.mxu0 0
      %588 = vmatpush2.bf16.xpose.msra.mxu0 0
      %589 = vmatprep.subr.bf16.mxu0 0
      %590 = vmatpush2.bf16.xpose.msra.mxu0 0
      %591 = vmatprep.subr.bf16.mxu0 0
      %592 = vmatpush2.bf16.xpose.msra.mxu0 0
      %593 = vmatprep.mubr.bf16.mxu0 0
      %594 = vmatmul.mubr.bf16.gmra.mxu0 %v556
      %v595 = vpop.f32.mrf.mxu0
      %v596 = vadd.f32 %v429, %v595
      %v597 = vpop.f32.mrf.mxu0
      %v598 = vpop.f32.mrf.mxu0
      %v599 = vpop.f32.mrf.mxu0
      %600 = vdwg.mxu0
      %v601 = vsel %vm436, %v596, -inf
      %602 = vmax.xlane.f32.xlu0 %v601
      %v603 = vpop.xlane.xlu0 %602
      %v604 = vsub.f32 %v596, %v603
      %v605 = vmul.f32 %v604, 1.442695
      %v606 = vpow.pop %v605
      %v607 = vsel %vm436, %v606, 0.0
      %608 = vadd.xlane.f32.xlu0 %v607
      %v609 = vpop.xlane.xlu0 %608
      %v610 = vrcp.pop %v609
      %v611 = vmul.f32 %v606, %v610
      %v612 = vpack.c.bf16 %v611, %v611
      %613 = vrot.lane.b32.xlu0 %v550, 56
      %v614 = vpop.permute.xlu0 %613
      %v616 = vsel %vm436, %v612, 0
      %v619 = vsel %vm500, %v614, 0
      %621 = vmatprep.subr.bf16.mxu0 0
      %622 = vmatpush1.bf16.msra.mxu0 0
      %623 = vmatprep.subr.bf16.mxu0 0
      %624 = vmatpush1.bf16.msra.mxu0 0
      %625 = vmatprep.subr.bf16.mxu0 0
      %626 = vmatpush1.bf16.msra.mxu0 0
      %627 = vmatprep.subr.bf16.mxu0 0
      %628 = vmatpush1.bf16.msra.mxu0 0
      %629 = vmatprep.subr.bf16.mxu0 0
      %630 = vmatpush1.bf16.msra.mxu0 0
      %631 = vmatprep.subr.bf16.mxu0 0
      %632 = vmatpush1.bf16.msra.mxu0 0
      %633 = vmatprep.subr.bf16.mxu0 0
      %634 = vmatpush1.bf16.msra.mxu0 0
      %635 = vmatprep.subr.bf16.mxu0 0
      %636 = vmatpush1.bf16.msra.mxu0 %v619
      %637 = vmatprep.subr.bf16.mxu0 0
      %638 = vmatpush2.bf16.msra.mxu0 0
      %639 = vmatprep.subr.bf16.mxu0 0
      %640 = vmatpush2.bf16.msra.mxu0 0
      %641 = vmatprep.subr.bf16.mxu0 0
      %642 = vmatpush2.bf16.msra.mxu0 0
      %643 = vmatprep.subr.bf16.mxu0 0
      %644 = vmatpush2.bf16.msra.mxu0 0
      %645 = vmatprep.subr.bf16.mxu0 0
      %646 = vmatpush2.bf16.msra.mxu0 0
      %647 = vmatprep.subr.bf16.mxu0 0
      %648 = vmatpush2.bf16.msra.mxu0 0
      %649 = vmatprep.subr.bf16.mxu0 0
      %650 = vmatpush2.bf16.msra.mxu0 0
      %651 = vmatprep.subr.bf16.mxu0 0
      %652 = vmatpush2.bf16.msra.mxu0 0
      %653 = vmatprep.mubr.bf16.mxu0 0
      %654 = vmatmul.mubr.bf16.gmra.mxu0 %v616
      %v655 = vpop.f32.mrf.mxu0
      %v656 = vadd.f32 0.0, %v655
      %v657 = vpop.f32.mrf.mxu0
      %v658 = vpop.f32.mrf.mxu0
      %v659 = vpop.f32.mrf.mxu0
      %660 = vdwg.mxu0
      %v661 = vpack.c.bf16 %v656, %v656
      %v663 = vunpack.c.l.b16 %v661
      %v664 = vpack.c.b16 %v663, %v663
      %665 = vrot.lane.b32.xlu0 %v664, 8
      %v666 = vpop.permute.xlu0 %665
      %vm668 = vcmask 126016
      %669 = vst.msk [vmem:[#allocation3] sm:$0xf] %vm668, %v666
      %v670 = vld [vmem:[#allocation2] sm:$0xf]
      %v672 = vunpack.c.l.b16 %v670
      %v673 = vpack.c.b16 %v672, %v672
      %674 = vrot.lane.b32.xlu0 %v673, 112
      %v675 = vpop.permute.xlu0 %674
      %676 = vrot.lane.b32.xlu0 %v673, 80
      %v677 = vpop.permute.xlu0 %676
      %v679 = vsel %vm436, %v675, 0
      %v682 = vsel %vm436, %v677, 0
      %684 = vmatprep.subr.bf16.mxu0 0
      %685 = vmatpush1.bf16.xpose.msra.mxu0 0
      %686 = vmatprep.subr.bf16.mxu0 0
      %687 = vmatpush1.bf16.xpose.msra.mxu0 0
      %688 = vmatprep.subr.bf16.mxu0 0
      %689 = vmatpush1.bf16.xpose.msra.mxu0 0
      %690 = vmatprep.subr.bf16.mxu0 0
      %691 = vmatpush1.bf16.xpose.msra.mxu0 0
      %692 = vmatprep.subr.bf16.mxu0 0
      %693 = vmatpush1.bf16.xpose.msra.mxu0 0
      %694 = vmatprep.subr.bf16.mxu0 0
      %695 = vmatpush1.bf16.xpose.msra.mxu0 0
      %696 = vmatprep.subr.bf16.mxu0 0
      %697 = vmatpush1.bf16.xpose.msra.mxu0 0
      %698 = vmatprep.subr.bf16.mxu0 0
      %699 = vmatpush1.bf16.xpose.msra.mxu0 %v682
      %700 = vmatprep.subr.bf16.mxu0 0
      %701 = vmatpush2.bf16.xpose.msra.mxu0 0
      %702 = vmatprep.subr.bf16.mxu0 0
      %703 = vmatpush2.bf16.xpose.msra.mxu0 0
      %704 = vmatprep.subr.bf16.mxu0 0
      %705 = vmatpush2.bf16.xpose.msra.mxu0 0
      %706 = vmatprep.subr.bf16.mxu0 0
      %707 = vmatpush2.bf16.xpose.msra.mxu0 0
      %708 = vmatprep.subr.bf16.mxu0 0
      %709 = vmatpush2.bf16.xpose.msra.mxu0 0
      %710 = vmatprep.subr.bf16.mxu0 0
      %711 = vmatpush2.bf16.xpose.msra.mxu0 0
      %712 = vmatprep.subr.bf16.mxu0 0
      %713 = vmatpush2.bf16.xpose.msra.mxu0 0
      %714 = vmatprep.subr.bf16.mxu0 0
      %715 = vmatpush2.bf16.xpose.msra.mxu0 0
      %716 = vmatprep.mubr.bf16.mxu0 0
      %717 = vmatmul.mubr.bf16.gmra.mxu0 %v679
      %v718 = vpop.f32.mrf.mxu0
      %v719 = vadd.f32 %v429, %v718
      %v720 = vpop.f32.mrf.mxu0
      %v721 = vpop.f32.mrf.mxu0
      %v722 = vpop.f32.mrf.mxu0
      %723 = vdwg.mxu0
      %v724 = vsel %vm436, %v719, -inf
      %725 = vmax.xlane.f32.xlu0 %v724
      %v726 = vpop.xlane.xlu0 %725
      %v727 = vsub.f32 %v719, %v726
      %v728 = vmul.f32 %v727, 1.442695
      %v729 = vpow.pop %v728
      %v730 = vsel %vm436, %v729, 0.0
      %731 = vadd.xlane.f32.xlu0 %v730
      %v732 = vpop.xlane.xlu0 %731
      %v733 = vrcp.pop %v732
      %v734 = vmul.f32 %v729, %v733
      %v735 = vpack.c.bf16 %v734, %v734
      %736 = vrot.lane.b32.xlu0 %v673, 48
      %v737 = vpop.permute.xlu0 %736
      %v739 = vsel %vm436, %v735, 0
      %v742 = vsel %vm500, %v737, 0
      %744 = vmatprep.subr.bf16.mxu0 0
      %745 = vmatpush1.bf16.msra.mxu0 0
      %746 = vmatprep.subr.bf16.mxu0 0
      %747 = vmatpush1.bf16.msra.mxu0 0
      %748 = vmatprep.subr.bf16.mxu0 0
      %749 = vmatpush1.bf16.msra.mxu0 0
      %750 = vmatprep.subr.bf16.mxu0 0
      %751 = vmatpush1.bf16.msra.mxu0 0
      %752 = vmatprep.subr.bf16.mxu0 0
      %753 = vmatpush1.bf16.msra.mxu0 0
      %754 = vmatprep.subr.bf16.mxu0 0
      %755 = vmatpush1.bf16.msra.mxu0 0
      %756 = vmatprep.subr.bf16.mxu0 0
      %757 = vmatpush1.bf16.msra.mxu0 0
      %758 = vmatprep.subr.bf16.mxu0 0
      %759 = vmatpush1.bf16.msra.mxu0 %v742
      %760 = vmatprep.subr.bf16.mxu0 0
      %761 = vmatpush2.bf16.msra.mxu0 0
      %762 = vmatprep.subr.bf16.mxu0 0
      %763 = vmatpush2.bf16.msra.mxu0 0
      %764 = vmatprep.subr.bf16.mxu0 0
      %765 = vmatpush2.bf16.msra.mxu0 0
      %766 = vmatprep.subr.bf16.mxu0 0
      %767 = vmatpush2.bf16.msra.mxu0 0
      %768 = vmatprep.subr.bf16.mxu0 0
      %769 = vmatpush2.bf16.msra.mxu0 0
      %770 = vmatprep.subr.bf16.mxu0 0
      %771 = vmatpush2.bf16.msra.mxu0 0
      %772 = vmatprep.subr.bf16.mxu0 0
      %773 = vmatpush2.bf16.msra.mxu0 0
      %774 = vmatprep.subr.bf16.mxu0 0
      %775 = vmatpush2.bf16.msra.mxu0 0
      %776 = vmatprep.mubr.bf16.mxu0 0
      %777 = vmatmul.mubr.bf16.gmra.mxu0 %v739
      %v778 = vpop.f32.mrf.mxu0
      %v779 = vadd.f32 0.0, %v778
      %v780 = vpop.f32.mrf.mxu0
      %v781 = vpop.f32.mrf.mxu0
      %v782 = vpop.f32.mrf.mxu0
      %783 = vdwg.mxu0
      %v784 = vpack.c.bf16 %v779, %v779
      %v786 = vunpack.c.l.b16 %v784
      %v787 = vpack.c.b16 %v786, %v786
      %788 = vrot.lane.b32.xlu0 %v787, 16
      %v789 = vpop.permute.xlu0 %788
      %vm791 = vcmask 191616
      %792 = vst.msk [vmem:[#allocation3] sm:$0xf] %vm791, %v789
      %v793 = vld [vmem:[#allocation2] sm:$0xf]
      %v795 = vunpack.c.l.b16 %v793
      %v796 = vpack.c.b16 %v795, %v795
      %797 = vrot.lane.b32.xlu0 %v796, 104
      %v798 = vpop.permute.xlu0 %797
      %799 = vrot.lane.b32.xlu0 %v796, 72
      %v800 = vpop.permute.xlu0 %799
      %v802 = vsel %vm436, %v798, 0
      %v805 = vsel %vm436, %v800, 0
      %807 = vmatprep.subr.bf16.mxu0 0
      %808 = vmatpush1.bf16.xpose.msra.mxu0 0
      %809 = vmatprep.subr.bf16.mxu0 0
      %810 = vmatpush1.bf16.xpose.msra.mxu0 0
      %811 = vmatprep.subr.bf16.mxu0 0
      %812 = vmatpush1.bf16.xpose.msra.mxu0 0
      %813 = vmatprep.subr.bf16.mxu0 0
      %814 = vmatpush1.bf16.xpose.msra.mxu0 0
      %815 = vmatprep.subr.bf16.mxu0 0
      %816 = vmatpush1.bf16.xpose.msra.mxu0 0
      %817 = vmatprep.subr.bf16.mxu0 0
      %818 = vmatpush1.bf16.xpose.msra.mxu0 0
      %819 = vmatprep.subr.bf16.mxu0 0
      %820 = vmatpush1.bf16.xpose.msra.mxu0 0
      %821 = vmatprep.subr.bf16.mxu0 0
      %822 = vmatpush1.bf16.xpose.msra.mxu0 %v805
      %823 = vmatprep.subr.bf16.mxu0 0
      %824 = vmatpush2.bf16.xpose.msra.mxu0 0
      %825 = vmatprep.subr.bf16.mxu0 0
      %826 = vmatpush2.bf16.xpose.msra.mxu0 0
      %827 = vmatprep.subr.bf16.mxu0 0
      %828 = vmatpush2.bf16.xpose.msra.mxu0 0
      %829 = vmatprep.subr.bf16.mxu0 0
      %830 = vmatpush2.bf16.xpose.msra.mxu0 0
      %831 = vmatprep.subr.bf16.mxu0 0
      %832 = vmatpush2.bf16.xpose.msra.mxu0 0
      %833 = vmatprep.subr.bf16.mxu0 0
      %834 = vmatpush2.bf16.xpose.msra.mxu0 0
      %835 = vmatprep.subr.bf16.mxu0 0
      %836 = vmatpush2.bf16.xpose.msra.mxu0 0
      %837 = vmatprep.subr.bf16.mxu0 0
      %838 = vmatpush2.bf16.xpose.msra.mxu0 0
      %839 = vmatprep.mubr.bf16.mxu0 0
      %840 = vmatmul.mubr.bf16.gmra.mxu0 %v802
      %v841 = vpop.f32.mrf.mxu0
      %v842 = vadd.f32 %v429, %v841
      %v843 = vpop.f32.mrf.mxu0
      %v844 = vpop.f32.mrf.mxu0
      %v845 = vpop.f32.mrf.mxu0
      %846 = vdwg.mxu0
      %v847 = vsel %vm436, %v842, -inf
      %848 = vmax.xlane.f32.xlu0 %v847
      %v849 = vpop.xlane.xlu0 %848
      %v850 = vsub.f32 %v842, %v849
      %v851 = vmul.f32 %v850, 1.442695
      %v852 = vpow.pop %v851
      %v853 = vsel %vm436, %v852, 0.0
      %854 = vadd.xlane.f32.xlu0 %v853
      %v855 = vpop.xlane.xlu0 %854
      %v856 = vrcp.pop %v855
      %v857 = vmul.f32 %v852, %v856
      %v858 = vpack.c.bf16 %v857, %v857
      %859 = vrot.lane.b32.xlu0 %v796, 40
      %v860 = vpop.permute.xlu0 %859
      %v862 = vsel %vm436, %v858, 0
      %v865 = vsel %vm500, %v860, 0
      %867 = vmatprep.subr.bf16.mxu0 0
      %868 = vmatpush1.bf16.msra.mxu0 0
      %869 = vmatprep.subr.bf16.mxu0 0
      %870 = vmatpush1.bf16.msra.mxu0 0
      %871 = vmatprep.subr.bf16.mxu0 0
      %872 = vmatpush1.bf16.msra.mxu0 0
      %873 = vmatprep.subr.bf16.mxu0 0
      %874 = vmatpush1.bf16.msra.mxu0 0
      %875 = vmatprep.subr.bf16.mxu0 0
      %876 = vmatpush1.bf16.msra.mxu0 0
      %877 = vmatprep.subr.bf16.mxu0 0
      %878 = vmatpush1.bf16.msra.mxu0 0
      %879 = vmatprep.subr.bf16.mxu0 0
      %880 = vmatpush1.bf16.msra.mxu0 0
      %881 = vmatprep.subr.bf16.mxu0 0
      %882 = vmatpush1.bf16.msra.mxu0 %v865
      %883 = vmatprep.subr.bf16.mxu0 0
      %884 = vmatpush2.bf16.msra.mxu0 0
      %885 = vmatprep.subr.bf16.mxu0 0
      %886 = vmatpush2.bf16.msra.mxu0 0
      %887 = vmatprep.subr.bf16.mxu0 0
      %888 = vmatpush2.bf16.msra.mxu0 0
      %889 = vmatprep.subr.bf16.mxu0 0
      %890 = vmatpush2.bf16.msra.mxu0 0
      %891 = vmatprep.subr.bf16.mxu0 0
      %892 = vmatpush2.bf16.msra.mxu0 0
      %893 = vmatprep.subr.bf16.mxu0 0
      %894 = vmatpush2.bf16.msra.mxu0 0
      %895 = vmatprep.subr.bf16.mxu0 0
      %896 = vmatpush2.bf16.msra.mxu0 0
      %897 = vmatprep.subr.bf16.mxu0 0
      %898 = vmatpush2.bf16.msra.mxu0 0
      %899 = vmatprep.mubr.bf16.mxu0 0
      %900 = vmatmul.mubr.bf16.gmra.mxu0 %v862
      %v901 = vpop.f32.mrf.mxu0
      %v902 = vadd.f32 0.0, %v901
      %v903 = vpop.f32.mrf.mxu0
      %v904 = vpop.f32.mrf.mxu0
      %v905 = vpop.f32.mrf.mxu0
      %906 = vdwg.mxu0
      %v907 = vpack.c.bf16 %v902, %v902
      %v909 = vunpack.c.l.b16 %v907
      %v910 = vpack.c.b16 %v909, %v909
      %911 = vrot.lane.b32.xlu0 %v910, 24
      %v912 = vpop.permute.xlu0 %911
      %vm914 = vcmask 257216
      %915 = vst.msk [vmem:[#allocation3] sm:$0xf] %vm914, %v912
      %v916 = vld [vmem:[#allocation3] sm:$0xf]
      %v917 = vld [vmem:[%s4] sm:$0xf]
      %v918 = vld [vmem:[%s4 + $0x4] sm:$0xf]
      %v919 = vld [vmem:[%s4 + $0x8] sm:$0xf]
      %v920 = vld [vmem:[%s4 + $0xc] sm:$0xf]
      %v921 = vlaneseq
      %v922 = vshrl.u32 %v921, 7
      %v923 = vsub.s32 0, %v922
      %v924 = vrot.slane %v347, %v923
      %v929 = vunpack.c.l.b16 %v917
      %v930 = vunpack.c.l.b16 %v918
      %v931 = vunpack.c.l.b16 %v919
      %v932 = vunpack.c.l.b16 %v920
      %v933 = vpack.c.b16 %v930, %v929
      %v934 = vpack.c.b16 %v932, %v931
      %v938 = vsel %vm377, %v916, 0
      %940 = vmatprep.subr.bf16.mxu0 0
      %941 = vmatpush1.bf16.msra.mxu0 0
      %942 = vmatprep.subr.bf16.mxu0 0
      %943 = vmatpush1.bf16.msra.mxu0 0
      %944 = vmatprep.subr.bf16.mxu0 0
      %945 = vmatpush1.bf16.msra.mxu0 0
      %946 = vmatprep.subr.bf16.mxu0 0
      %947 = vmatpush1.bf16.msra.mxu0 0
      %948 = vmatprep.subr.bf16.mxu0 0
      %949 = vmatpush1.bf16.msra.mxu0 0
      %950 = vmatprep.subr.bf16.mxu0 0
      %951 = vmatpush1.bf16.msra.mxu0 0
      %952 = vmatprep.subr.bf16.mxu0 0
      %953 = vmatpush1.bf16.msra.mxu0 %v934
      %954 = vmatprep.subr.bf16.mxu0 0
      %955 = vmatpush1.bf16.msra.mxu0 %v933
      %956 = vmatprep.subr.bf16.mxu0 0
      %957 = vmatpush2.bf16.msra.mxu0 0
      %958 = vmatprep.subr.bf16.mxu0 0
      %959 = vmatpush2.bf16.msra.mxu0 0
      %960 = vmatprep.subr.bf16.mxu0 0
      %961 = vmatpush2.bf16.msra.mxu0 0
      %962 = vmatprep.subr.bf16.mxu0 0
      %963 = vmatpush2.bf16.msra.mxu0 0
      %964 = vmatprep.subr.bf16.mxu0 0
      %965 = vmatpush2.bf16.msra.mxu0 0
      %966 = vmatprep.subr.bf16.mxu0 0
      %967 = vmatpush2.bf16.msra.mxu0 0
      %968 = vmatprep.subr.bf16.mxu0 0
      %969 = vmatpush2.bf16.msra.mxu0 0
      %970 = vmatprep.subr.bf16.mxu0 0
      %971 = vmatpush2.bf16.msra.mxu0 0
      %972 = vmatprep.mubr.bf16.mxu0 0
      %973 = vmatmul.mubr.bf16.gmra.mxu0 %v938
      %v974 = vpop.f32.mrf.mxu0
      %v975 = vadd.f32 %v924, %v974
      %v976 = vpop.f32.mrf.mxu0
      %v977 = vpop.f32.mrf.mxu0
      %v978 = vpop.f32.mrf.mxu0
      %979 = vdwg.mxu0
      %v980 = vadd.f32 %v975, %v343
      %v981 = vsel %vm377, %v980, 0.0
      %982 = vadd.xlane.f32.xlu0 %v981
      %v983 = vpop.xlane.xlu0 %982
      %v984 = vrcp.pop 32.0
      %v985 = vmul.f32 %v983, %v984
      %v986 = vsub.f32 %v980, %v985
      %v987 = vmul.f32 %v986, %v986
      %v988 = vsel %vm377, %v987, 0.0
      %989 = vadd.xlane.f32.xlu0 %v988
      %v990 = vpop.xlane.xlu0 %989
      %v991 = vmul.f32 %v990, %v984
      %v992 = vadd.f32 %v991, 1e-12
      %v993 = vrsqrt.pop %v992
      %v994 = vmul.f32 %v986, %v993
      %v995 = vlaneseq
      %v996 = vshrl.u32 %v995, 7
      %v997 = vsub.s32 0, %v996
      %v998 = vrot.slane %v348, %v997
      %v999 = vmul.f32 %v994, %v998
      %v1000 = vlaneseq
      %v1001 = vshrl.u32 %v1000, 7
      %v1002 = vsub.s32 0, %v1001
      %v1003 = vrot.slane %v349, %v1002
      %v1004 = vadd.f32 %v999, %v1003
      %v1005 = vpack.c.bf16 %v1004, %v1004
      %v1006 = vld [vmem:[%s5] sm:$0xf]
      %v1007 = vld [vmem:[%s5 + $0x4] sm:$0xf]
      %v1008 = vld [vmem:[%s5 + $0x8] sm:$0xf]
      %v1009 = vld [vmem:[%s5 + $0xc] sm:$0xf]
      %v1010 = vld [vmem:[%s6] sm:$0x1]
      %v1012 = vlaneseq
      %v1013 = vshrl.u32 %v1012, 7
      %v1014 = vsub.s32 0, %v1013
      %v1015 = vrot.slane %v1010, %v1014
      %v1021 = vunpack.c.l.b16 %v1006
      %v1022 = vunpack.c.l.b16 %v1007
      %v1023 = vunpack.c.l.b16 %v1008
      %v1024 = vunpack.c.l.b16 %v1009
      %v1025 = vpack.c.b16 %v1022, %v1021
      %v1026 = vpack.c.b16 %v1024, %v1023
      %v1030 = vsel %vm377, %v1005, 0
      %1032 = vmatprep.subr.bf16.mxu0 0
      %1033 = vmatpush1.bf16.msra.mxu0 0
      %1034 = vmatprep.subr.bf16.mxu0 0
      %1035 = vmatpush1.bf16.msra.mxu0 0
      %1036 = vmatprep.subr.bf16.mxu0 0
      %1037 = vmatpush1.bf16.msra.mxu0 0
      %1038 = vmatprep.subr.bf16.mxu0 0
      %1039 = vmatpush1.bf16.msra.mxu0 0
      %1040 = vmatprep.subr.bf16.mxu0 0
      %1041 = vmatpush1.bf16.msra.mxu0 0
      %1042 = vmatprep.subr.bf16.mxu0 0
      %1043 = vmatpush1.bf16.msra.mxu0 0
      %1044 = vmatprep.subr.bf16.mxu0 0
      %1045 = vmatpush1.bf16.msra.mxu0 %v1026
      %1046 = vmatprep.subr.bf16.mxu0 0
      %1047 = vmatpush1.bf16.msra.mxu0 %v1025
      %1048 = vmatprep.subr.bf16.mxu0 0
      %1049 = vmatpush2.bf16.msra.mxu0 0
      %1050 = vmatprep.subr.bf16.mxu0 0
      %1051 = vmatpush2.bf16.msra.mxu0 0
      %1052 = vmatprep.subr.bf16.mxu0 0
      %1053 = vmatpush2.bf16.msra.mxu0 0
      %1054 = vmatprep.subr.bf16.mxu0 0
      %1055 = vmatpush2.bf16.msra.mxu0 0
      %1056 = vmatprep.subr.bf16.mxu0 0
      %1057 = vmatpush2.bf16.msra.mxu0 0
      %1058 = vmatprep.subr.bf16.mxu0 0
      %1059 = vmatpush2.bf16.msra.mxu0 0
      %1060 = vmatprep.subr.bf16.mxu0 0
      %1061 = vmatpush2.bf16.msra.mxu0 0
      %1062 = vmatprep.subr.bf16.mxu0 0
      %1063 = vmatpush2.bf16.msra.mxu0 0
      %1064 = vmatprep.mubr.bf16.mxu0 0
      %1065 = vmatmul.mubr.bf16.gmra.mxu0 %v1030
      %v1066 = vpop.f32.mrf.mxu0
      %v1067 = vadd.f32 %v1015, %v1066
      %v1068 = vpop.f32.mrf.mxu0
      %v1069 = vpop.f32.mrf.mxu0
      %v1070 = vpop.f32.mrf.mxu0
      %1071 = vdwg.mxu0
      %v1072 = vmul.f32 %v1067, 0.5
      %v1073 = vmul.f32 %v1067, 0.044715
      %v1074 = vmul.f32 %v1073, %v1067
      %v1075 = vmul.f32 %v1074, %v1067
      %v1076 = vadd.f32 %v1067, %v1075
      %v1077 = vmul.f32 %v1076, 0.7978846
      %v1078 = vtanh.pop %v1077
      %v1079 = vadd.f32 %v1078, 1.0
      %v1080 = vmul.f32 %v1072, %v1079
      %v1081 = vpack.c.bf16 %v1080, %v1080
      %v1082 = vld [vmem:[%s7] sm:$0xf]
      %v1083 = vld [vmem:[%s7 + $0x4] sm:$0xf]
      %v1084 = vld [vmem:[%s7 + $0x8] sm:$0xf]
      %v1085 = vld [vmem:[%s7 + $0xc] sm:$0xf]
      %v1086 = vld [vmem:[%s7 + $0x10] sm:$0xf]
      %v1087 = vld [vmem:[%s7 + $0x14] sm:$0xf]
      %v1088 = vld [vmem:[%s7 + $0x18] sm:$0xf]
      %v1089 = vld [vmem:[%s7 + $0x1c] sm:$0xf]
      %v1090 = vld [vmem:[%s7 + $0x20] sm:$0xf]
      %v1091 = vld [vmem:[%s7 + $0x24] sm:$0xf]
      %v1092 = vld [vmem:[%s7 + $0x28] sm:$0xf]
      %v1093 = vld [vmem:[%s7 + $0x2c] sm:$0xf]
      %v1094 = vld [vmem:[%s7 + $0x30] sm:$0xf]
      %v1095 = vld [vmem:[%s7 + $0x34] sm:$0xf]
      %v1096 = vld [vmem:[%s7 + $0x38] sm:$0xf]
      %v1097 = vld [vmem:[%s7 + $0x3c] sm:$0xf]
      %v1098 = vlaneseq
      %v1099 = vshrl.u32 %v1098, 7
      %v1100 = vsub.s32 0, %v1099
      %v1101 = vrot.slane %v350, %v1100
      %v1118 = vunpack.c.l.b16 %v1082
      %v1119 = vunpack.c.l.b16 %v1083
      %v1120 = vunpack.c.l.b16 %v1084
      %v1121 = vunpack.c.l.b16 %v1085
      %v1122 = vunpack.c.l.b16 %v1086
      %v1123 = vunpack.c.l.b16 %v1087
      %v1124 = vunpack.c.l.b16 %v1088
      %v1125 = vunpack.c.l.b16 %v1089
      %v1126 = vunpack.c.l.b16 %v1090
      %v1127 = vunpack.c.l.b16 %v1091
      %v1128 = vunpack.c.l.b16 %v1092
      %v1129 = vunpack.c.l.b16 %v1093
      %v1130 = vunpack.c.l.b16 %v1094
      %v1131 = vunpack.c.l.b16 %v1095
      %v1132 = vunpack.c.l.b16 %v1096
      %v1133 = vunpack.c.l.b16 %v1097
      %v1134 = vpack.c.b16 %v1119, %v1118
      %v1135 = vpack.c.b16 %v1121, %v1120
      %v1136 = vpack.c.b16 %v1123, %v1122
      %v1137 = vpack.c.b16 %v1125, %v1124
      %v1138 = vpack.c.b16 %v1127, %v1126
      %v1139 = vpack.c.b16 %v1129, %v1128
      %v1140 = vpack.c.b16 %v1131, %v1130
      %v1141 = vpack.c.b16 %v1133, %v1132
      %1150 = vmatprep.subr.bf16.mxu0 0
      %1151 = vmatpush1.bf16.msra.mxu0 %v1141
      %1152 = vmatprep.subr.bf16.mxu0 0
      %1153 = vmatpush1.bf16.msra.mxu0 %v1140
      %1154 = vmatprep.subr.bf16.mxu0 0
      %1155 = vmatpush1.bf16.msra.mxu0 %v1139
      %1156 = vmatprep.subr.bf16.mxu0 0
      %1157 = vmatpush1.bf16.msra.mxu0 %v1138
      %1158 = vmatprep.subr.bf16.mxu0 0
      %1159 = vmatpush1.bf16.msra.mxu0 %v1137
      %1160 = vmatprep.subr.bf16.mxu0 0
      %1161 = vmatpush1.bf16.msra.mxu0 %v1136
      %1162 = vmatprep.subr.bf16.mxu0 0
      %1163 = vmatpush1.bf16.msra.mxu0 %v1135
      %1164 = vmatprep.subr.bf16.mxu0 0
      %1165 = vmatpush1.bf16.msra.mxu0 %v1134
      %1166 = vmatprep.subr.bf16.mxu0 0
      %1167 = vmatpush2.bf16.msra.mxu0 0
      %1168 = vmatprep.subr.bf16.mxu0 0
      %1169 = vmatpush2.bf16.msra.mxu0 0
      %1170 = vmatprep.subr.bf16.mxu0 0
      %1171 = vmatpush2.bf16.msra.mxu0 0
      %1172 = vmatprep.subr.bf16.mxu0 0
      %1173 = vmatpush2.bf16.msra.mxu0 0
      %1174 = vmatprep.subr.bf16.mxu0 0
      %1175 = vmatpush2.bf16.msra.mxu0 0
      %1176 = vmatprep.subr.bf16.mxu0 0
      %1177 = vmatpush2.bf16.msra.mxu0 0
      %1178 = vmatprep.subr.bf16.mxu0 0
      %1179 = vmatpush2.bf16.msra.mxu0 0
      %1180 = vmatprep.subr.bf16.mxu0 0
      %1181 = vmatpush2.bf16.msra.mxu0 0
      %1182 = vmatprep.mubr.bf16.mxu0 0
      %1183 = vmatmul.mubr.bf16.gmra.mxu0 %v1081
      %v1184 = vpop.f32.mrf.mxu0
      %v1185 = vadd.f32 %v1101, %v1184
      %v1186 = vpop.f32.mrf.mxu0
      %v1187 = vpop.f32.mrf.mxu0
      %v1188 = vpop.f32.mrf.mxu0
      %1189 = vdwg.mxu0
      %v1190 = vadd.f32 %v1185, %v1004
      %v1191 = vsel %vm377, %v1190, 0.0
      %1192 = vadd.xlane.f32.xlu0 %v1191
      %v1193 = vpop.xlane.xlu0 %1192
      %v1194 = vmul.f32 %v1193, %v984
      %v1195 = vsub.f32 %v1190, %v1194
      %v1196 = vmul.f32 %v1195, %v1195
      %v1197 = vsel %vm377, %v1196, 0.0
      %1198 = vadd.xlane.f32.xlu0 %v1197
      %v1199 = vpop.xlane.xlu0 %1198
      %v1200 = vmul.f32 %v1199, %v984
      %v1201 = vadd.f32 %v1200, 1e-12
      %v1202 = vrsqrt.pop %v1201
      %v1203 = vmul.f32 %v1195, %v1202
      %v1204 = vlaneseq
      %v1205 = vshrl.u32 %v1204, 7
      %v1206 = vsub.s32 0, %v1205
      %v1207 = vrot.slane %v351, %v1206
      %v1208 = vmul.f32 %v1203, %v1207
      %v1209 = vlaneseq
      %v1210 = vshrl.u32 %v1209, 7
      %v1211 = vsub.s32 0, %v1210
      %v1212 = vrot.slane %v352, %v1211
      %v1213 = vadd.f32 %v1208, %v1212
      %1214 = vst.msk [vmem:[%s341] sm:$0xff] %vm377, %v1213
      %p1215 = scmp.lt.s32.totalorder %s20, 1
      %s1216 = scalar_select %p1215, %s20, 1
      %s1217 = smul.addr %s1216, 8
      %s1218 = scalar_lea.vmem %s9, %s1217
      // Predicated region
      $region57: #{bert_class_forward.5} parent=55 // pred_check
        %p1219 = pneg %p237
      $region58: #{bert_class_forward.5} parent=55 // pred_check_branch
        %1221 = sbr.rel (%p1219) target = $region60
      $region59: #{bert_class_forward.5} parent=55 // pred_region
        _
      $region60: #{bert_class_forward.5} parent=55 // pred_fallthru
        _
    $region56: #{bert_class_forward.5} parent=5 // pred_fallthru
      _
    %p1222 = scmp.le.s32.totalorder 2, %s15
    // Predicated region
    $region61: #{bert_class_forward.5} parent=5 // pred_check
      %p1223 = pneg %p1222
    $region62: #{bert_class_forward.5} parent=5 // pred_check_branch
      %1225 = sbr.rel (%p1223) target = $region64
    $region63: #{bert_class_forward.5} parent=5 // pred_region
      %s1226 = ssub.s32 %s15, 2
      // Predicated region
      $region65: #{bert_class_forward.5} parent=63 // pred_check
        %p1227 = pneg %p243
      $region66: #{bert_class_forward.5} parent=63 // pred_check_branch
        %1229 = sbr.rel (%p1227) target = $region68
      $region67: #{bert_class_forward.5} parent=63 // pred_region
        %p1230 = scmp.lt.s32.totalorder %s21, 1
        %s1231 = scalar_select %p1230, %s21, 1
        %s1232 = smul.addr %s1231, 8
        %s1233 = scalar_lea.vmem %s9, %s1232
      $region68: #{bert_class_forward.5} parent=63 // pred_fallthru
        _
    $region64: #{bert_class_forward.5} parent=5 // pred_fallthru
      _
  $region6: #{bert_class_forward.5} parent=0 // loop_footer
    %s19 = sadd.s32 1, %s15
  $region7: #{bert_class_forward.5} parent=0 // loop_footer_branch
    %14 = sbr.rel target = $region3
  $region8: #{bert_class_forward.5} parent=0 // loop_exit
    _

</llo_original>
